<compile_context>
chip_gen: v7x
topology: tpu7x:2x2x1
jax: 0.10.0
libtpu: 0.0.40
codegen_flags: <defaults>
</compile_context>

<pallas_src>
import functools

import jax
import jax.numpy as jnp
from jax.experimental import pallas as pl
from jax.experimental.pallas import tpu as pltpu

# ---------------------------------------------------------------------------
# Model hyper-parameters (small, TPU-tile friendly)
# ---------------------------------------------------------------------------
OUTPUT_SIZE = 256   # vocab
EMBED_SIZE  = 32
HIDDEN_SIZE = 128
Z_SIZE      = 32
N_LAYERS    = 2
BATCH       = 8

EZ    = EMBED_SIZE + Z_SIZE                 # LSTM layer-0 input size (=64)
FC_IN = EMBED_SIZE + Z_SIZE + HIDDEN_SIZE   # fc_out input size, rows packed [emb; z; hidden]


# ---------------------------------------------------------------------------
# Pallas kernel: fused T-step multi-layer LSTM decode + output projection.
# grid = (T,).  Weights: constant index_map -> resident in VMEM for all steps.
# h/c: revisited output blocks -> live in VMEM across steps, HBM write at end.
# ---------------------------------------------------------------------------
def decoder_kernel(xz_ref, h0_ref, c0_ref,
                   wih0_ref, wihr_ref, whh_ref, b_ref, wout_ref, bout_ref,
                   out_ref, h_ref, c_ref,
                   *, ez, hid, n_layers):
    t = pl.program_id(0)

    @pl.when(t == 0)
    def _():                                 # seed the resident state once
        h_ref[...] = h0_ref[...]
        c_ref[...] = c0_ref[...]

    def sigmoid(x):                          # 1 EUP push instead of exp+recip
        return 0.5 * (1.0 + jnp.tanh(0.5 * x))

    xz = xz_ref[0]                           # (B, E+Z)  bf16
    layer_in = xz
    for l in range(n_layers):                # static unroll, n_layers small
        h_l = h_ref[l]                       # (B, H) f32
        c_l = c_ref[l]                       # (B, H) f32

        if l == 0:
            xw = jnp.dot(layer_in, wih0_ref[...],
                         preferred_element_type=jnp.float32)
        else:
            xw = jnp.dot(layer_in, wihr_ref[l - 1],
                         preferred_element_type=jnp.float32)
        gates = (xw
                 + jnp.dot(h_l.astype(jnp.bfloat16), whh_ref[l],
                           preferred_element_type=jnp.float32)
                 + b_ref[l])                 # (B, 4H) f32

        i_g = sigmoid(gates[:, 0 * hid:1 * hid])
        f_g = sigmoid(gates[:, 1 * hid:2 * hid])
        g_g = jnp.tanh(gates[:, 2 * hid:3 * hid])
        o_g = sigmoid(gates[:, 3 * hid:4 * hid])

        c_new = f_g * c_l + i_g * g_g        # f32 cell state
        h_new = o_g * jnp.tanh(c_new)

        h_ref[l] = h_new
        c_ref[l] = c_new
        layer_in = h_new.astype(jnp.bfloat16)

    # fc_out with rows packed [emb; z; hidden]: 2 fat matmuls, ref-sliced.
    logits = (jnp.dot(xz, wout_ref[0:ez, :], preferred_element_type=jnp.float32)
              + jnp.dot(layer_in, wout_ref[ez:, :],
                        preferred_element_type=jnp.float32)
              + bout_ref[...])
    out_ref[0] = logits


def _const_spec(shape):
    return pl.BlockSpec(shape, lambda t: (0,) * len(shape))


# ---------------------------------------------------------------------------
# Wrappers
# ---------------------------------------------------------------------------
def decode_sequence(token_ids, hidden, cell, z, params):
    """Run T decode steps in ONE pallas_call.

    token_ids: (T, B) int32; hidden/cell: (L, B, H) f32; z: (B, Z) f32.
    Returns (logits (T, B, O), (h, c)).
    """
    T, B = token_ids.shape
    # Embedding gather + lane-dim concat are trivial XLA ops -> do them here.
    emb = jnp.take(params["emb_table"], token_ids, axis=0)          # (T, B, E)
    zb = jnp.broadcast_to(z[None], (T, B, Z_SIZE))
    xz_seq = jnp.concatenate([emb, zb], axis=-1).astype(jnp.bfloat16)  # (T, B, E+Z)

    kernel = functools.partial(decoder_kernel, ez=EZ, hid=HIDDEN_SIZE,
                               n_layers=N_LAYERS)

    # TODO(synk): for v7x, add a leading "parallel" grid axis over independent
    # decode streams so the second TensorCore is not idle (time axis itself is
    # sequential).
    out, h_out, c_out = pl.pallas_call(
        kernel,
        grid=(T,),
        in_specs=[
            pl.BlockSpec((1, B, EZ), lambda t: (t, 0, 0)),            # per-step xz
            _const_spec((N_LAYERS, B, HIDDEN_SIZE)),                  # h0
            _const_spec((N_LAYERS, B, HIDDEN_SIZE)),                  # c0
            _const_spec((EZ, 4 * HIDDEN_SIZE)),                       # W_ih layer 0
            _const_spec((N_LAYERS - 1, HIDDEN_SIZE, 4 * HIDDEN_SIZE)),  # W_ih layers>0
            _const_spec((N_LAYERS, HIDDEN_SIZE, 4 * HIDDEN_SIZE)),    # W_hh
            _const_spec((N_LAYERS, 1, 4 * HIDDEN_SIZE)),              # b (combined)
            _const_spec((FC_IN, OUTPUT_SIZE)),                        # W_out [emb;z;hid]
            _const_spec((1, OUTPUT_SIZE)),                            # b_out
        ],
        out_specs=[
            pl.BlockSpec((1, B, OUTPUT_SIZE), lambda t: (t, 0, 0)),   # per-step logits
            _const_spec((N_LAYERS, B, HIDDEN_SIZE)),                  # h (resident)
            _const_spec((N_LAYERS, B, HIDDEN_SIZE)),                  # c (resident)
        ],
        out_shape=[
            jax.ShapeDtypeStruct((T, B, OUTPUT_SIZE), jnp.float32),
            jax.ShapeDtypeStruct((N_LAYERS, B, HIDDEN_SIZE), jnp.float32),
            jax.ShapeDtypeStruct((N_LAYERS, B, HIDDEN_SIZE), jnp.float32),
        ],
        compiler_params=pltpu.CompilerParams(
            dimension_semantics=("arbitrary",)),   # time axis is sequential
    )(xz_seq, hidden, cell,
      params["w_ih0"], params["w_ih_rest"], params["w_hh"], params["b"],
      params["w_out"], params["b_out"])

    return out, (h_out, c_out)


def another_decoder_forward(input_ids, state, z, params):
    """Exact module semantics: one decode step.  input_ids: (B,) int32."""
    hidden, cell = state
    out_seq, (h, c) = decode_sequence(input_ids[None, :], hidden, cell, z, params)
    return out_seq[0], (h, c)


# ---------------------------------------------------------------------------
# Pure-JAX reference (same packed params, same bf16 matmul operands,
# jax.nn.sigmoid instead of the tanh trick) for a correctness check.
# ---------------------------------------------------------------------------
def reference_step(ids, h, c, z, params):
    emb = jnp.take(params["emb_table"], ids, axis=0)
    xz = jnp.concatenate([emb, z], axis=1).astype(jnp.bfloat16)
    layer_in = xz
    hs, cs = [], []
    H = HIDDEN_SIZE
    for l in range(N_LAYERS):
        w_ih = params["w_ih0"] if l == 0 else params["w_ih_rest"][l - 1]
        gates = (jnp.dot(layer_in, w_ih, preferred_element_type=jnp.float32)
                 + jnp.dot(h[l].astype(jnp.bfloat16), params["w_hh"][l],
                           preferred_element_type=jnp.float32)
                 + params["b"][l])
        i_g = jax.nn.sigmoid(gates[:, 0 * H:1 * H])
        f_g = jax.nn.sigmoid(gates[:, 1 * H:2 * H])
        g_g = jnp.tanh(gates[:, 2 * H:3 * H])
        o_g = jax.nn.sigmoid(gates[:, 3 * H:4 * H])
        c_new = f_g * c[l] + i_g * g_g
        h_new = o_g * jnp.tanh(c_new)
        hs.append(h_new)
        cs.append(c_new)
        layer_in = h_new.astype(jnp.bfloat16)
    logits = (jnp.dot(xz, params["w_out"][:EZ], preferred_element_type=jnp.float32)
              + jnp.dot(layer_in, params["w_out"][EZ:],
                        preferred_element_type=jnp.float32)
              + params["b_out"])
    return logits, jnp.stack(hs), jnp.stack(cs)


# ---------------------------------------------------------------------------
# Deterministic synthetic parameters (weights stored in bf16, biases in f32).
# `b` is the combined PyTorch bias (b_ih + b_hh); `w_out` rows are packed in
# [emb; z; hidden] order (reordered from PyTorch's [emb; hidden; z]).
# ---------------------------------------------------------------------------
def init_params(key):
    ks = jax.random.split(key, 7)
    s = 0.05
    return {
        "emb_table": s * jax.random.normal(
            ks[0], (OUTPUT_SIZE, EMBED_SIZE), jnp.float32),
        "w_ih0": (s * jax.random.normal(
            ks[1], (EZ, 4 * HIDDEN_SIZE), jnp.float32)).astype(jnp.bfloat16),
        "w_ih_rest": (s * jax.random.normal(
            ks[2], (N_LAYERS - 1, HIDDEN_SIZE, 4 * HIDDEN_SIZE),
            jnp.float32)).astype(jnp.bfloat16),
        "w_hh": (s * jax.random.normal(
            ks[3], (N_LAYERS, HIDDEN_SIZE, 4 * HIDDEN_SIZE),
            jnp.float32)).astype(jnp.bfloat16),
        "b": s * jax.random.normal(
            ks[4], (N_LAYERS, 1, 4 * HIDDEN_SIZE), jnp.float32),
        "w_out": (s * jax.random.normal(
            ks[5], (FC_IN, OUTPUT_SIZE), jnp.float32)).astype(jnp.bfloat16),
        "b_out": s * jax.random.normal(
            ks[6], (1, OUTPUT_SIZE), jnp.float32),
    }


if __name__ == "__main__":
    key = jax.random.PRNGKey(0)
    k_param, k_ids, k_h, k_c, k_z = jax.random.split(key, 5)

    params = init_params(k_param)
    hidden = 0.1 * jax.random.normal(k_h, (N_LAYERS, BATCH, HIDDEN_SIZE), jnp.float32)
    cell = 0.1 * jax.random.normal(k_c, (N_LAYERS, BATCH, HIDDEN_SIZE), jnp.float32)
    z = jax.random.normal(k_z, (BATCH, Z_SIZE), jnp.float32)

    # --- single decode step: exact PyTorch-module forward semantics ---------
    ids = jax.random.randint(k_ids, (BATCH,), 0, OUTPUT_SIZE, jnp.int32)
    out, (h1, c1) = another_decoder_forward(ids, (hidden, cell), z, params)
    jax.block_until_ready((out, h1, c1))

    ref_out, ref_h, ref_c = reference_step(ids, hidden, cell, z, params)
    assert out.shape == (BATCH, OUTPUT_SIZE)
    assert h1.shape == (N_LAYERS, BATCH, HIDDEN_SIZE)
    assert c1.shape == (N_LAYERS, BATCH, HIDDEN_SIZE)
    assert jnp.allclose(out, ref_out, rtol=1e-3, atol=1e-3)
    assert jnp.allclose(h1, ref_h, rtol=1e-3, atol=1e-3)
    assert jnp.allclose(c1, ref_c, rtol=1e-3, atol=1e-3)

    # --- fused T-step decode: amortizes weight DMA + launch over T steps ----
    T = 8
    ids_seq = jax.random.randint(jax.random.fold_in(k_ids, 1),
                                 (T, BATCH), 0, OUTPUT_SIZE, jnp.int32)
    out_seq, (hT, cT) = decode_sequence(ids_seq, hidden, cell, z, params)
    jax.block_until_ready((out_seq, hT, cT))

    ref_outs, rh, rc = [], hidden, cell
    for t in range(T):
        o, rh, rc = reference_step(ids_seq[t], rh, rc, z, params)
        ref_outs.append(o)
    ref_seq = jnp.stack(ref_outs)
    assert out_seq.shape == (T, BATCH, OUTPUT_SIZE)
    assert jnp.allclose(out_seq, ref_seq, rtol=1e-3, atol=1e-3)
    assert jnp.allclose(hT, rh, rtol=1e-3, atol=1e-3)
    assert jnp.allclose(cT, rc, rtol=1e-3, atol=1e-3)

    print("KERNEL_OK")
</pallas_src>

<mosaic_0001>
module attributes {stable_mosaic.version = 11 : i64} {
  func.func @decoder_kernel(%arg0: i32, %arg1: memref<1x8x64xbf16, #tpu.memory_space<vmem>>, %arg2: memref<2x8x128xf32, #tpu.memory_space<vmem>>, %arg3: memref<2x8x128xf32, #tpu.memory_space<vmem>>, %arg4: memref<64x512xbf16, #tpu.memory_space<vmem>>, %arg5: memref<1x128x512xbf16, #tpu.memory_space<vmem>>, %arg6: memref<2x128x512xbf16, #tpu.memory_space<vmem>>, %arg7: memref<2x1x512xf32, #tpu.memory_space<vmem>>, %arg8: memref<192x256xbf16, #tpu.memory_space<vmem>>, %arg9: memref<1x256xf32, #tpu.memory_space<vmem>>, %arg10: memref<1x8x256xf32, #tpu.memory_space<vmem>>, %arg11: memref<2x8x128xf32, #tpu.memory_space<vmem>>, %arg12: memref<2x8x128xf32, #tpu.memory_space<vmem>>) attributes {dimension_semantics = [#tpu.dimension_semantics<arbitrary>], iteration_bounds = array<i64: 1>, scalar_prefetch = 0 : i64, scratch_operands = 0 : i64, tpu.core_type = #tpu.core_type<tc>, window_params = [{transform_indices = @transform_0, window_bounds = array<i64: 1, 8, 64>}, {pipeline_mode = #tpu.pipeline_mode<synchronous>, transform_indices = @transform_1, window_bounds = array<i64: 2, 8, 128>}, {pipeline_mode = #tpu.pipeline_mode<synchronous>, transform_indices = @transform_2, window_bounds = array<i64: 2, 8, 128>}, {pipeline_mode = #tpu.pipeline_mode<synchronous>, transform_indices = @transform_3, window_bounds = array<i64: 64, 512>}, {pipeline_mode = #tpu.pipeline_mode<synchronous>, transform_indices = @transform_4, window_bounds = array<i64: 1, 128, 512>}, {pipeline_mode = #tpu.pipeline_mode<synchronous>, transform_indices = @transform_5, window_bounds = array<i64: 2, 128, 512>}, {pipeline_mode = #tpu.pipeline_mode<synchronous>, transform_indices = @transform_6, window_bounds = array<i64: 2, 1, 512>}, {pipeline_mode = #tpu.pipeline_mode<synchronous>, transform_indices = @transform_7, window_bounds = array<i64: 192, 256>}, {pipeline_mode = #tpu.pipeline_mode<synchronous>, transform_indices = @transform_8, window_bounds = array<i64: 1, 256>}, {transform_indices = @transform_9, window_bounds = array<i64: 1, 8, 256>}, {pipeline_mode = #tpu.pipeline_mode<synchronous>, transform_indices = @transform_10, window_bounds = array<i64: 2, 8, 128>}, {pipeline_mode = #tpu.pipeline_mode<synchronous>, transform_indices = @transform_11, window_bounds = array<i64: 2, 8, 128>}]} {
    %c0_i32 = arith.constant 0 : i32
    %0 = arith.cmpi eq, %arg0, %c0_i32 : i32
    %1 = arith.extui %0 : i1 to i32
    %c0_i32_0 = arith.constant 0 : i32
    %2 = arith.cmpi ne, %1, %c0_i32_0 : i32
    scf.if %2 {
      %c0_74 = arith.constant 0 : index
      %c0_75 = arith.constant 0 : index
      %c0_76 = arith.constant 0 : index
      %123 = vector.load %arg2[%c0_74, %c0_75, %c0_76] : memref<2x8x128xf32, #tpu.memory_space<vmem>>, vector<2x8x128xf32>
      %c0_77 = arith.constant 0 : index
      %c0_78 = arith.constant 0 : index
      %c0_79 = arith.constant 0 : index
      %124 = vector.load %arg11[%c0_77, %c0_78, %c0_79] : memref<2x8x128xf32, #tpu.memory_space<vmem>>, vector<2x8x128xf32>
      tpu.vector_store %arg11[%c0_77, %c0_78, %c0_79], %123 {strides = array<i32>} : memref<2x8x128xf32, #tpu.memory_space<vmem>>, vector<2x8x128xf32>,
      %c0_80 = arith.constant 0 : index
      %c0_81 = arith.constant 0 : index
      %c0_82 = arith.constant 0 : index
      %125 = vector.load %arg3[%c0_80, %c0_81, %c0_82] : memref<2x8x128xf32, #tpu.memory_space<vmem>>, vector<2x8x128xf32>
      %c0_83 = arith.constant 0 : index
      %c0_84 = arith.constant 0 : index
      %c0_85 = arith.constant 0 : index
      %126 = vector.load %arg12[%c0_83, %c0_84, %c0_85] : memref<2x8x128xf32, #tpu.memory_space<vmem>>, vector<2x8x128xf32>
      tpu.vector_store %arg12[%c0_83, %c0_84, %c0_85], %125 {strides = array<i32>} : memref<2x8x128xf32, #tpu.memory_space<vmem>>, vector<2x8x128xf32>,
    } else {
    }
    %c0 = arith.constant 0 : index
    %c0_1 = arith.constant 0 : index
    %c0_2 = arith.constant 0 : index
    %3 = vector.load %arg1[%c0, %c0_1, %c0_2] : memref<1x8x64xbf16, #tpu.memory_space<vmem>>, vector<1x8x64xbf16>
    %4 = vector.shape_cast %3 : vector<1x8x64xbf16> to vector<8x64xbf16>
    %c0_3 = arith.constant 0 : index
    %c0_4 = arith.constant 0 : index
    %c0_5 = arith.constant 0 : index
    %5 = vector.load %arg11[%c0_3, %c0_4, %c0_5] : memref<2x8x128xf32, #tpu.memory_space<vmem>>, vector<1x8x128xf32>
    %6 = vector.shape_cast %5 : vector<1x8x128xf32> to vector<8x128xf32>
    %c0_6 = arith.constant 0 : index
    %c0_7 = arith.constant 0 : index
    %c0_8 = arith.constant 0 : index
    %7 = vector.load %arg12[%c0_6, %c0_7, %c0_8] : memref<2x8x128xf32, #tpu.memory_space<vmem>>, vector<1x8x128xf32>
    %8 = vector.shape_cast %7 : vector<1x8x128xf32> to vector<8x128xf32>
    %c0_9 = arith.constant 0 : index
    %c0_10 = arith.constant 0 : index
    %9 = vector.load %arg4[%c0_9, %c0_10] : memref<64x512xbf16, #tpu.memory_space<vmem>>, vector<64x512xbf16>
    %cst = arith.constant dense<0.000000e+00> : vector<8x512xf32>
    %10 = tpu.matmul %4, %9, %cst {dimension_numbers = #tpu.dot_dimension_numbers<[1], [0], [0], [1], [0, 0, 1, 1], [], []>} : vector<8x64xbf16>, vector<64x512xbf16>, vector<8x512xf32> -> vector<8x512xf32>
    %11 = arith.truncf %6 : vector<8x128xf32> to vector<8x128xbf16>
    %c0_11 = arith.constant 0 : index
    %c0_12 = arith.constant 0 : index
    %c0_13 = arith.constant 0 : index
    %12 = vector.load %arg6[%c0_11, %c0_12, %c0_13] : memref<2x128x512xbf16, #tpu.memory_space<vmem>>, vector<1x128x512xbf16>
    %13 = vector.shape_cast %12 : vector<1x128x512xbf16> to vector<128x512xbf16>
    %cst_14 = arith.constant dense<0.000000e+00> : vector<8x512xf32>
    %14 = tpu.matmul %11, %13, %cst_14 {dimension_numbers = #tpu.dot_dimension_numbers<[1], [0], [0], [1], [0, 0, 1, 1], [], []>} : vector<8x128xbf16>, vector<128x512xbf16>, vector<8x512xf32> -> vector<8x512xf32>
    %15 = arith.addf %10, %14 : vector<8x512xf32>
    %c0_15 = arith.constant 0 : index
    %c0_16 = arith.constant 0 : index
    %c0_17 = arith.constant 0 : index
    %16 = vector.load %arg7[%c0_15, %c0_16, %c0_17] : memref<2x1x512xf32, #tpu.memory_space<vmem>>, vector<1x1x512xf32>
    %17 = vector.shape_cast %16 : vector<1x1x512xf32> to vector<1x512xf32>
    %18 = vector.broadcast %17 : vector<1x512xf32> to vector<8x512xf32>
    %19 = arith.addf %15, %18 : vector<8x512xf32>
    %20 = vector.extract_strided_slice %19 {offsets = [0, 0], sizes = [8, 128], strides = [1, 1]} : vector<8x512xf32> to vector<8x128xf32>
    %cst_18 = arith.constant 5.000000e-01 : f32
    %21 = vector.broadcast %cst_18 : f32 to vector<8x128xf32>
    %22 = arith.mulf %21, %20 : vector<8x128xf32>
    %23 = math.tanh %22 : vector<8x128xf32>
    %cst_19 = arith.constant 1.000000e+00 : f32
    %24 = vector.broadcast %cst_19 : f32 to vector<8x128xf32>
    %25 = arith.addf %24, %23 : vector<8x128xf32>
    %cst_20 = arith.constant 5.000000e-01 : f32
    %26 = vector.broadcast %cst_20 : f32 to vector<8x128xf32>
    %27 = arith.mulf %26, %25 : vector<8x128xf32>
    %28 = vector.extract_strided_slice %19 {offsets = [0, 128], sizes = [8, 128], strides = [1, 1]} : vector<8x512xf32> to vector<8x128xf32>
    %cst_21 = arith.constant 5.000000e-01 : f32
    %29 = vector.broadcast %cst_21 : f32 to vector<8x128xf32>
    %30 = arith.mulf %29, %28 : vector<8x128xf32>
    %31 = math.tanh %30 : vector<8x128xf32>
    %cst_22 = arith.constant 1.000000e+00 : f32
    %32 = vector.broadcast %cst_22 : f32 to vector<8x128xf32>
    %33 = arith.addf %32, %31 : vector<8x128xf32>
    %cst_23 = arith.constant 5.000000e-01 : f32
    %34 = vector.broadcast %cst_23 : f32 to vector<8x128xf32>
    %35 = arith.mulf %34, %33 : vector<8x128xf32>
    %36 = vector.extract_strided_slice %19 {offsets = [0, 256], sizes = [8, 128], strides = [1, 1]} : vector<8x512xf32> to vector<8x128xf32>
    %37 = math.tanh %36 : vector<8x128xf32>
    %38 = vector.extract_strided_slice %19 {offsets = [0, 384], sizes = [8, 128], strides = [1, 1]} : vector<8x512xf32> to vector<8x128xf32>
    %cst_24 = arith.constant 5.000000e-01 : f32
    %39 = vector.broadcast %cst_24 : f32 to vector<8x128xf32>
    %40 = arith.mulf %39, %38 : vector<8x128xf32>
    %41 = math.tanh %40 : vector<8x128xf32>
    %cst_25 = arith.constant 1.000000e+00 : f32
    %42 = vector.broadcast %cst_25 : f32 to vector<8x128xf32>
    %43 = arith.addf %42, %41 : vector<8x128xf32>
    %cst_26 = arith.constant 5.000000e-01 : f32
    %44 = vector.broadcast %cst_26 : f32 to vector<8x128xf32>
    %45 = arith.mulf %44, %43 : vector<8x128xf32>
    %46 = arith.mulf %35, %8 : vector<8x128xf32>
    %47 = arith.mulf %27, %37 : vector<8x128xf32>
    %48 = arith.addf %46, %47 : vector<8x128xf32>
    %49 = math.tanh %48 : vector<8x128xf32>
    %50 = arith.mulf %45, %49 : vector<8x128xf32>
    %c0_27 = arith.constant 0 : index
    %c0_28 = arith.constant 0 : index
    %c0_29 = arith.constant 0 : index
    %51 = vector.load %arg11[%c0_27, %c0_28, %c0_29] : memref<2x8x128xf32, #tpu.memory_space<vmem>>, vector<1x8x128xf32>
    %52 = vector.shape_cast %51 : vector<1x8x128xf32> to vector<8x128xf32>
    %53 = vector.shape_cast %50 : vector<8x128xf32> to vector<1x8x128xf32>
    tpu.vector_store %arg11[%c0_27, %c0_28, %c0_29], %53 {strides = array<i32>} : memref<2x8x128xf32, #tpu.memory_space<vmem>>, vector<1x8x128xf32>,
    %c0_30 = arith.constant 0 : index
    %c0_31 = arith.constant 0 : index
    %c0_32 = arith.constant 0 : index
    %54 = vector.load %arg12[%c0_30, %c0_31, %c0_32] : memref<2x8x128xf32, #tpu.memory_space<vmem>>, vector<1x8x128xf32>
    %55 = vector.shape_cast %54 : vector<1x8x128xf32> to vector<8x128xf32>
    %56 = vector.shape_cast %48 : vector<8x128xf32> to vector<1x8x128xf32>
    tpu.vector_store %arg12[%c0_30, %c0_31, %c0_32], %56 {strides = array<i32>} : memref<2x8x128xf32, #tpu.memory_space<vmem>>, vector<1x8x128xf32>,
    %57 = arith.truncf %50 : vector<8x128xf32> to vector<8x128xbf16>
    %c1 = arith.constant 1 : index
    %c0_33 = arith.constant 0 : index
    %c0_34 = arith.constant 0 : index
    %58 = vector.load %arg11[%c1, %c0_33, %c0_34] : memref<2x8x128xf32, #tpu.memory_space<vmem>>, vector<1x8x128xf32>
    %59 = vector.shape_cast %58 : vector<1x8x128xf32> to vector<8x128xf32>
    %c1_35 = arith.constant 1 : index
    %c0_36 = arith.constant 0 : index
    %c0_37 = arith.constant 0 : index
    %60 = vector.load %arg12[%c1_35, %c0_36, %c0_37] : memref<2x8x128xf32, #tpu.memory_space<vmem>>, vector<1x8x128xf32>
    %61 = vector.shape_cast %60 : vector<1x8x128xf32> to vector<8x128xf32>
    %c0_38 = arith.constant 0 : index
    %c0_39 = arith.constant 0 : index
    %c0_40 = arith.constant 0 : index
    %62 = vector.load %arg5[%c0_38, %c0_39, %c0_40] : memref<1x128x512xbf16, #tpu.memory_space<vmem>>, vector<1x128x512xbf16>
    %63 = vector.shape_cast %62 : vector<1x128x512xbf16> to vector<128x512xbf16>
    %cst_41 = arith.constant dense<0.000000e+00> : vector<8x512xf32>
    %64 = tpu.matmul %57, %63, %cst_41 {dimension_numbers = #tpu.dot_dimension_numbers<[1], [0], [0], [1], [0, 0, 1, 1], [], []>} : vector<8x128xbf16>, vector<128x512xbf16>, vector<8x512xf32> -> vector<8x512xf32>
    %65 = arith.truncf %59 : vector<8x128xf32> to vector<8x128xbf16>
    %c1_42 = arith.constant 1 : index
    %c0_43 = arith.constant 0 : index
    %c0_44 = arith.constant 0 : index
    %66 = vector.load %arg6[%c1_42, %c0_43, %c0_44] : memref<2x128x512xbf16, #tpu.memory_space<vmem>>, vector<1x128x512xbf16>
    %67 = vector.shape_cast %66 : vector<1x128x512xbf16> to vector<128x512xbf16>
    %cst_45 = arith.constant dense<0.000000e+00> : vector<8x512xf32>
    %68 = tpu.matmul %65, %67, %cst_45 {dimension_numbers = #tpu.dot_dimension_numbers<[1], [0], [0], [1], [0, 0, 1, 1], [], []>} : vector<8x128xbf16>, vector<128x512xbf16>, vector<8x512xf32> -> vector<8x512xf32>
    %69 = arith.addf %64, %68 : vector<8x512xf32>
    %c1_46 = arith.constant 1 : index
    %c0_47 = arith.constant 0 : index
    %c0_48 = arith.constant 0 : index
    %70 = vector.load %arg7[%c1_46, %c0_47, %c0_48] : memref<2x1x512xf32, #tpu.memory_space<vmem>>, vector<1x1x512xf32>
    %71 = vector.shape_cast %70 : vector<1x1x512xf32> to vector<1x512xf32>
    %72 = vector.broadcast %71 : vector<1x512xf32> to vector<8x512xf32>
    %73 = arith.addf %69, %72 : vector<8x512xf32>
    %74 = vector.extract_strided_slice %73 {offsets = [0, 0], sizes = [8, 128], strides = [1, 1]} : vector<8x512xf32> to vector<8x128xf32>
    %cst_49 = arith.constant 5.000000e-01 : f32
    %75 = vector.broadcast %cst_49 : f32 to vector<8x128xf32>
    %76 = arith.mulf %75, %74 : vector<8x128xf32>
    %77 = math.tanh %76 : vector<8x128xf32>
    %cst_50 = arith.constant 1.000000e+00 : f32
    %78 = vector.broadcast %cst_50 : f32 to vector<8x128xf32>
    %79 = arith.addf %78, %77 : vector<8x128xf32>
    %cst_51 = arith.constant 5.000000e-01 : f32
    %80 = vector.broadcast %cst_51 : f32 to vector<8x128xf32>
    %81 = arith.mulf %80, %79 : vector<8x128xf32>
    %82 = vector.extract_strided_slice %73 {offsets = [0, 128], sizes = [8, 128], strides = [1, 1]} : vector<8x512xf32> to vector<8x128xf32>
    %cst_52 = arith.constant 5.000000e-01 : f32
    %83 = vector.broadcast %cst_52 : f32 to vector<8x128xf32>
    %84 = arith.mulf %83, %82 : vector<8x128xf32>
    %85 = math.tanh %84 : vector<8x128xf32>
    %cst_53 = arith.constant 1.000000e+00 : f32
    %86 = vector.broadcast %cst_53 : f32 to vector<8x128xf32>
    %87 = arith.addf %86, %85 : vector<8x128xf32>
    %cst_54 = arith.constant 5.000000e-01 : f32
    %88 = vector.broadcast %cst_54 : f32 to vector<8x128xf32>
    %89 = arith.mulf %88, %87 : vector<8x128xf32>
    %90 = vector.extract_strided_slice %73 {offsets = [0, 256], sizes = [8, 128], strides = [1, 1]} : vector<8x512xf32> to vector<8x128xf32>
    %91 = math.tanh %90 : vector<8x128xf32>
    %92 = vector.extract_strided_slice %73 {offsets = [0, 384], sizes = [8, 128], strides = [1, 1]} : vector<8x512xf32> to vector<8x128xf32>
    %cst_55 = arith.constant 5.000000e-01 : f32
    %93 = vector.broadcast %cst_55 : f32 to vector<8x128xf32>
    %94 = arith.mulf %93, %92 : vector<8x128xf32>
    %95 = math.tanh %94 : vector<8x128xf32>
    %cst_56 = arith.constant 1.000000e+00 : f32
    %96 = vector.broadcast %cst_56 : f32 to vector<8x128xf32>
    %97 = arith.addf %96, %95 : vector<8x128xf32>
    %cst_57 = arith.constant 5.000000e-01 : f32
    %98 = vector.broadcast %cst_57 : f32 to vector<8x128xf32>
    %99 = arith.mulf %98, %97 : vector<8x128xf32>
    %100 = arith.mulf %89, %61 : vector<8x128xf32>
    %101 = arith.mulf %81, %91 : vector<8x128xf32>
    %102 = arith.addf %100, %101 : vector<8x128xf32>
    %103 = math.tanh %102 : vector<8x128xf32>
    %104 = arith.mulf %99, %103 : vector<8x128xf32>
    %c1_58 = arith.constant 1 : index
    %c0_59 = arith.constant 0 : index
    %c0_60 = arith.constant 0 : index
    %105 = vector.load %arg11[%c1_58, %c0_59, %c0_60] : memref<2x8x128xf32, #tpu.memory_space<vmem>>, vector<1x8x128xf32>
    %106 = vector.shape_cast %105 : vector<1x8x128xf32> to vector<8x128xf32>
    %107 = vector.shape_cast %104 : vector<8x128xf32> to vector<1x8x128xf32>
    tpu.vector_store %arg11[%c1_58, %c0_59, %c0_60], %107 {strides = array<i32>} : memref<2x8x128xf32, #tpu.memory_space<vmem>>, vector<1x8x128xf32>,
    %c1_61 = arith.constant 1 : index
    %c0_62 = arith.constant 0 : index
    %c0_63 = arith.constant 0 : index
    %108 = vector.load %arg12[%c1_61, %c0_62, %c0_63] : memref<2x8x128xf32, #tpu.memory_space<vmem>>, vector<1x8x128xf32>
    %109 = vector.shape_cast %108 : vector<1x8x128xf32> to vector<8x128xf32>
    %110 = vector.shape_cast %102 : vector<8x128xf32> to vector<1x8x128xf32>
    tpu.vector_store %arg12[%c1_61, %c0_62, %c0_63], %110 {strides = array<i32>} : memref<2x8x128xf32, #tpu.memory_space<vmem>>, vector<1x8x128xf32>,
    %111 = arith.truncf %104 : vector<8x128xf32> to vector<8x128xbf16>
    %c0_64 = arith.constant 0 : index
    %c0_65 = arith.constant 0 : index
    %112 = vector.load %arg8[%c0_64, %c0_65] : memref<192x256xbf16, #tpu.memory_space<vmem>>, vector<64x256xbf16>
    %cst_66 = arith.constant dense<0.000000e+00> : vector<8x256xf32>
    %113 = tpu.matmul %4, %112, %cst_66 {dimension_numbers = #tpu.dot_dimension_numbers<[1], [0], [0], [1], [0, 0, 1, 1], [], []>} : vector<8x64xbf16>, vector<64x256xbf16>, vector<8x256xf32> -> vector<8x256xf32>
    %c64 = arith.constant 64 : index
    %c0_67 = arith.constant 0 : index
    %114 = vector.load %arg8[%c64, %c0_67] : memref<192x256xbf16, #tpu.memory_space<vmem>>, vector<128x256xbf16>
    %cst_68 = arith.constant dense<0.000000e+00> : vector<8x256xf32>
    %115 = tpu.matmul %111, %114, %cst_68 {dimension_numbers = #tpu.dot_dimension_numbers<[1], [0], [0], [1], [0, 0, 1, 1], [], []>} : vector<8x128xbf16>, vector<128x256xbf16>, vector<8x256xf32> -> vector<8x256xf32>
    %116 = arith.addf %113, %115 : vector<8x256xf32>
    %c0_69 = arith.constant 0 : index
    %c0_70 = arith.constant 0 : index
    %117 = vector.load %arg9[%c0_69, %c0_70] : memref<1x256xf32, #tpu.memory_space<vmem>>, vector<1x256xf32>
    %118 = vector.broadcast %117 : vector<1x256xf32> to vector<8x256xf32>
    %119 = arith.addf %116, %118 : vector<8x256xf32>
    %c0_71 = arith.constant 0 : index
    %c0_72 = arith.constant 0 : index
    %c0_73 = arith.constant 0 : index
    %120 = vector.load %arg10[%c0_71, %c0_72, %c0_73] : memref<1x8x256xf32, #tpu.memory_space<vmem>>, vector<1x8x256xf32>
    %121 = vector.shape_cast %120 : vector<1x8x256xf32> to vector<8x256xf32>
    %122 = vector.shape_cast %119 : vector<8x256xf32> to vector<1x8x256xf32>
    tpu.vector_store %arg10[%c0_71, %c0_72, %c0_73], %122 {strides = array<i32>} : memref<1x8x256xf32, #tpu.memory_space<vmem>>, vector<1x8x256xf32>,
    return
  }
  func.func @transform_0(%arg0: i32) -> (i32, i32, i32) {
    %c0_i32 = arith.constant 0 : i32
    %c0_i32_0 = arith.constant 0 : i32
    %c0_i32_1 = arith.constant 0 : i32
    return %arg0, %c0_i32, %c0_i32_0 : i32, i32, i32
  }
  func.func @transform_1(%arg0: i32) -> (i32, i32, i32) {
    %c0_i32 = arith.constant 0 : i32
    %c0_i32_0 = arith.constant 0 : i32
    %c0_i32_1 = arith.constant 0 : i32
    %c0_i32_2 = arith.constant 0 : i32
    return %c0_i32, %c0_i32_0, %c0_i32_1 : i32, i32, i32
  }
  func.func @transform_2(%arg0: i32) -> (i32, i32, i32) {
    %c0_i32 = arith.constant 0 : i32
    %c0_i32_0 = arith.constant 0 : i32
    %c0_i32_1 = arith.constant 0 : i32
    %c0_i32_2 = arith.constant 0 : i32
    return %c0_i32, %c0_i32_0, %c0_i32_1 : i32, i32, i32
  }
  func.func @transform_3(%arg0: i32) -> (i32, i32) {
    %c0_i32 = arith.constant 0 : i32
    %c0_i32_0 = arith.constant 0 : i32
    %c0_i32_1 = arith.constant 0 : i32
    return %c0_i32, %c0_i32_0 : i32, i32
  }
  func.func @transform_4(%arg0: i32) -> (i32, i32, i32) {
    %c0_i32 = arith.constant 0 : i32
    %c0_i32_0 = arith.constant 0 : i32
    %c0_i32_1 = arith.constant 0 : i32
    %c0_i32_2 = arith.constant 0 : i32
    return %c0_i32, %c0_i32_0, %c0_i32_1 : i32, i32, i32
  }
  func.func @transform_5(%arg0: i32) -> (i32, i32, i32) {
    %c0_i32 = arith.constant 0 : i32
    %c0_i32_0 = arith.constant 0 : i32
    %c0_i32_1 = arith.constant 0 : i32
    %c0_i32_2 = arith.constant 0 : i32
    return %c0_i32, %c0_i32_0, %c0_i32_1 : i32, i32, i32
  }
  func.func @transform_6(%arg0: i32) -> (i32, i32, i32) {
    %c0_i32 = arith.constant 0 : i32
    %c0_i32_0 = arith.constant 0 : i32
    %c0_i32_1 = arith.constant 0 : i32
    %c0_i32_2 = arith.constant 0 : i32
    return %c0_i32, %c0_i32_0, %c0_i32_1 : i32, i32, i32
  }
  func.func @transform_7(%arg0: i32) -> (i32, i32) {
    %c0_i32 = arith.constant 0 : i32
    %c0_i32_0 = arith.constant 0 : i32
    %c0_i32_1 = arith.constant 0 : i32
    return %c0_i32, %c0_i32_0 : i32, i32
  }
  func.func @transform_8(%arg0: i32) -> (i32, i32) {
    %c0_i32 = arith.constant 0 : i32
    %c0_i32_0 = arith.constant 0 : i32
    %c0_i32_1 = arith.constant 0 : i32
    return %c0_i32, %c0_i32_0 : i32, i32
  }
  func.func @transform_9(%arg0: i32) -> (i32, i32, i32) {
    %c0_i32 = arith.constant 0 : i32
    %c0_i32_0 = arith.constant 0 : i32
    %c0_i32_1 = arith.constant 0 : i32
    return %arg0, %c0_i32, %c0_i32_0 : i32, i32, i32
  }
  func.func @transform_10(%arg0: i32) -> (i32, i32, i32) {
    %c0_i32 = arith.constant 0 : i32
    %c0_i32_0 = arith.constant 0 : i32
    %c0_i32_1 = arith.constant 0 : i32
    %c0_i32_2 = arith.constant 0 : i32
    return %c0_i32, %c0_i32_0, %c0_i32_1 : i32, i32, i32
  }
  func.func @transform_11(%arg0: i32) -> (i32, i32, i32) {
    %c0_i32 = arith.constant 0 : i32
    %c0_i32_0 = arith.constant 0 : i32
    %c0_i32_1 = arith.constant 0 : i32
    %c0_i32_2 = arith.constant 0 : i32
    return %c0_i32, %c0_i32_0, %c0_i32_1 : i32, i32, i32
  }
}

</mosaic_0001>

<llo_original>
// kernel: tpu_custom_call.1
$region0: #{tpu_custom_call.1}
  #allocation0 [shape = 'u32[]', space=smem, size = 0x4, offset = 0x4, fixed_abs, tag = 'smem constant byte address 0x4 - core index']
  #allocation1 [shape = 'u32[144,128]{1,0:T(1,128)}', space=vmem, size = 0x12000, scoped, tag = 'internal scratch']
  %s0 = inlined_call_operand.hbm [shape: bf16[1,8,64], index: 0, kind: input, shape index: {}]
  %s1 = inlined_call_operand.hbm [shape: f32[2,8,128], index: 1, kind: input, shape index: {}]
  %s2 = inlined_call_operand.hbm [shape: f32[2,8,128], index: 2, kind: input, shape index: {}]
  %s3 = inlined_call_operand.hbm [shape: bf16[64,512], index: 3, kind: input, shape index: {}]
  %s4 = inlined_call_operand.hbm [shape: bf16[1,128,512], index: 4, kind: input, shape index: {}]
  %s5 = inlined_call_operand.hbm [shape: bf16[2,128,512], index: 5, kind: input, shape index: {}]
  %s6 = inlined_call_operand.vmem [shape: f32[2,1,512], index: 6, kind: input, shape index: {}]
  %s7 = inlined_call_operand.hbm [shape: bf16[192,256], index: 7, kind: input, shape index: {}]
  %s8 = inlined_call_operand.vmem [shape: f32[1,256], index: 8, kind: input, shape index: {}]
  %s9 = inlined_call_operand.hbm [shape: f32[1,8,256], index: 9, kind: output, shape index: {0}]
  %s10 = inlined_call_operand.hbm [shape: f32[2,8,128], index: 10, kind: output, shape index: {1}]
  %s11 = inlined_call_operand.hbm [shape: f32[2,8,128], index: 11, kind: output, shape index: {2}]
  %12 = xla_tuple %s9, %s10, %s11
  %s13 = sld [smem:[#allocation0]]
  $region94: #{tpu_custom_call.1} parent=0
    _
  %s15 = ssub.s32 1, %s13
  %s16 = scalar_select 0, %s15, %s13
  $region1: #{tpu_custom_call.1} parent=0
    #allocation2 [shape = 'u8[2048]{0}', space=vmem, size = 0x800, scoped, tag = 'input window, operand 0, single buffered']
    #allocation3 [shape = 's32[1]{0}', space=sflag, size = 0x4, scoped, tag = 'scoped memory for tpu_custom_call.1']
    #allocation4 [shape = 's32[1]{0}', space=sflag, size = 0x4, scoped, tag = 'scoped memory for tpu_custom_call.1']
    #allocation5 [shape = 'u8[8192]{0}', space=vmem, size = 0x2000, scoped, tag = 'input window, operand 1, single buffered']
    #allocation6 [shape = 's32[1]{0}', space=sflag, size = 0x4, scoped, tag = 'scoped memory for tpu_custom_call.1']
    #allocation7 [shape = 'u8[8192]{0}', space=vmem, size = 0x2000, scoped, tag = 'input window, operand 2, single buffered']
    #allocation8 [shape = 'u8[65536]{0}', space=vmem, size = 0x10000, scoped, tag = 'input window, operand 3, single buffered']
    #allocation9 [shape = 's32[1]{0}', space=sflag, size = 0x4, scoped, tag = 'scoped memory for tpu_custom_call.1']
    #allocation10 [shape = 'u8[131072]{0}', space=vmem, size = 0x20000, scoped, tag = 'input window, operand 4, single buffered']
    #allocation11 [shape = 'u8[262144]{0}', space=vmem, size = 0x40000, scoped, tag = 'input window, operand 5, single buffered']
    #allocation12 [shape = 's32[1]{0}', space=sflag, size = 0x4, scoped, tag = 'scoped memory for tpu_custom_call.1']
    #allocation13 [shape = 'u8[98304]{0}', space=vmem, size = 0x18000, scoped, tag = 'input window, operand 7, single buffered']
    #allocation14 [shape = 'u8[8192]{0}', space=vmem, size = 0x2000, scoped, tag = 'output window, operand 0, single buffered']
    #allocation15 [shape = 'u8[8192]{0}', space=vmem, size = 0x2000, scoped, tag = 'output window, operand 1, single buffered']
    #allocation16 [shape = 's32[1]{0}', space=sflag, size = 0x4, scoped, tag = 'scoped memory for tpu_custom_call.1']
    #allocation17 [shape = 'u8[8192]{0}', space=vmem, size = 0x2000, scoped, tag = 'output window, operand 2, single buffered']
    %17 = vsyncpa [#allocation3], 0
    %18 = vsyncpa [#allocation6], 0
    %19 = vsyncpa [#allocation9], 0
    %20 = vsyncpa [#allocation12], 0
    %21 = vsyncpa [#allocation4], 0
    %22 = vsyncpa [#allocation16], 0
    // Predicated region
    $region2: #{tpu_custom_call.1} parent=1 // pred_check
      _
    $region3: #{tpu_custom_call.1} parent=1 // pred_check_branch
      %24 = sbr.rel (0) target = $region5
    $region4: #{tpu_custom_call.1} parent=1 // pred_region
      %s26 = ssub.s32 64, 64
      %27 = vsyncadd [#allocation3], %s26
      %s29 = sshll.u32 [#allocation2], 4
      %s30 = int_to_ptr.vmem [resolvable:$true] %s29
      %32 = dma.hbm_to_vmem [thread:$0]  %s0, 64, %s30, [#allocation3]
    $region5: #{tpu_custom_call.1} parent=1 // pred_fallthru
      _
    // Predicated region
    $region6: #{tpu_custom_call.1} parent=1 // pred_check
      _
    $region7: #{tpu_custom_call.1} parent=1 // pred_check_branch
      %34 = sbr.rel (0) target = $region9
    $region8: #{tpu_custom_call.1} parent=1 // pred_region
      %s36 = ssub.s32 256, 256
      %37 = vsyncadd [#allocation6], %s36
      %s38 = sshll.u32 [#allocation5], 4
      %s39 = int_to_ptr.vmem [resolvable:$true] %s38
      %44 = dma.hbm_to_vmem [thread:$0]  %s1, 256, %s39, [#allocation6], 128, 128, 8
    $region9: #{tpu_custom_call.1} parent=1 // pred_fallthru
      _
    // Predicated region
    $region10: #{tpu_custom_call.1} parent=1 // pred_check
      _
    $region11: #{tpu_custom_call.1} parent=1 // pred_check_branch
      %46 = sbr.rel (0) target = $region13
    $region12: #{tpu_custom_call.1} parent=1 // pred_region
      %s48 = ssub.s32 256, 256
      %49 = vsyncadd [#allocation6], %s48
      %s50 = sshll.u32 [#allocation7], 4
      %s51 = int_to_ptr.vmem [resolvable:$true] %s50
      %56 = dma.hbm_to_vmem [thread:$0]  %s2, 256, %s51, [#allocation6], 128, 128, 8
    $region13: #{tpu_custom_call.1} parent=1 // pred_fallthru
      _
    // Predicated region
    $region14: #{tpu_custom_call.1} parent=1 // pred_check
      _
    $region15: #{tpu_custom_call.1} parent=1 // pred_check_branch
      %58 = sbr.rel (0) target = $region17
    $region16: #{tpu_custom_call.1} parent=1 // pred_region
      %s60 = ssub.s32 2048, 2048
      %61 = vsyncadd [#allocation9], %s60
      %s62 = sshll.u32 [#allocation8], 4
      %s63 = int_to_ptr.vmem [resolvable:$true] %s62
      %68 = dma.hbm_to_vmem [thread:$0]  %s3, 2048, %s63, [#allocation9], 256, 256, 16
    $region17: #{tpu_custom_call.1} parent=1 // pred_fallthru
      _
    // Predicated region
    $region18: #{tpu_custom_call.1} parent=1 // pred_check
      _
    $region19: #{tpu_custom_call.1} parent=1 // pred_check_branch
      %70 = sbr.rel (0) target = $region21
    $region20: #{tpu_custom_call.1} parent=1 // pred_region
      %s72 = ssub.s32 4096, 4096
      %73 = vsyncadd [#allocation9], %s72
      %s74 = sshll.u32 [#allocation10], 4
      %s75 = int_to_ptr.vmem [resolvable:$true] %s74
      %80 = dma.hbm_to_vmem [thread:$0]  %s4, 4096, %s75, [#allocation9], 256, 256, 16
    $region21: #{tpu_custom_call.1} parent=1 // pred_fallthru
      _
    // Predicated region
    $region22: #{tpu_custom_call.1} parent=1 // pred_check
      _
    $region23: #{tpu_custom_call.1} parent=1 // pred_check_branch
      %82 = sbr.rel (0) target = $region25
    $region24: #{tpu_custom_call.1} parent=1 // pred_region
      %s84 = ssub.s32 8192, 8192
      %85 = vsyncadd [#allocation12], %s84
      %s86 = sshll.u32 [#allocation11], 4
      %s87 = int_to_ptr.vmem [resolvable:$true] %s86
      %92 = dma.hbm_to_vmem [thread:$0]  %s5, 8192, %s87, [#allocation12], 256, 256, 16
    $region25: #{tpu_custom_call.1} parent=1 // pred_fallthru
      _
    // Predicated region
    $region26: #{tpu_custom_call.1} parent=1 // pred_check
      _
    $region27: #{tpu_custom_call.1} parent=1 // pred_check_branch
      %94 = sbr.rel (0) target = $region29
    $region28: #{tpu_custom_call.1} parent=1 // pred_region
      _
    $region29: #{tpu_custom_call.1} parent=1 // pred_fallthru
      _
    // Predicated region
    $region30: #{tpu_custom_call.1} parent=1 // pred_check
      _
    $region31: #{tpu_custom_call.1} parent=1 // pred_check_branch
      %96 = sbr.rel (0) target = $region33
    $region32: #{tpu_custom_call.1} parent=1 // pred_region
      %s98 = ssub.s32 3072, 3072
      %99 = vsyncadd [#allocation12], %s98
      %s100 = sshll.u32 [#allocation13], 4
      %s101 = int_to_ptr.vmem [resolvable:$true] %s100
      %106 = dma.hbm_to_vmem [thread:$0]  %s7, 3072, %s101, [#allocation12], 128, 128, 8
    $region33: #{tpu_custom_call.1} parent=1 // pred_fallthru
      _
    // Predicated region
    $region34: #{tpu_custom_call.1} parent=1 // pred_check
      _
    $region35: #{tpu_custom_call.1} parent=1 // pred_check_branch
      %108 = sbr.rel (0) target = $region37
    $region36: #{tpu_custom_call.1} parent=1 // pred_region
      _
    $region37: #{tpu_custom_call.1} parent=1 // pred_fallthru
      _
    // Predicated region
    $region38: #{tpu_custom_call.1} parent=1 // pred_check
      _
    $region39: #{tpu_custom_call.1} parent=1 // pred_check_branch
      %110 = sbr.rel (0) target = $region41
    $region40: #{tpu_custom_call.1} parent=1 // pred_region
      %111 = dma.done [#allocation3], 64
    $region41: #{tpu_custom_call.1} parent=1 // pred_fallthru
      _
    // Predicated region
    $region42: #{tpu_custom_call.1} parent=1 // pred_check
      _
    $region43: #{tpu_custom_call.1} parent=1 // pred_check_branch
      %113 = sbr.rel (0) target = $region45
    $region44: #{tpu_custom_call.1} parent=1 // pred_region
      %114 = dma.done [#allocation6], 256
    $region45: #{tpu_custom_call.1} parent=1 // pred_fallthru
      _
    // Predicated region
    $region46: #{tpu_custom_call.1} parent=1 // pred_check
      _
    $region47: #{tpu_custom_call.1} parent=1 // pred_check_branch
      %116 = sbr.rel (0) target = $region49
    $region48: #{tpu_custom_call.1} parent=1 // pred_region
      %117 = dma.done [#allocation6], 256
    $region49: #{tpu_custom_call.1} parent=1 // pred_fallthru
      _
    // Predicated region
    $region50: #{tpu_custom_call.1} parent=1 // pred_check
      _
    $region51: #{tpu_custom_call.1} parent=1 // pred_check_branch
      %119 = sbr.rel (0) target = $region53
    $region52: #{tpu_custom_call.1} parent=1 // pred_region
      %120 = dma.done [#allocation9], 2048
    $region53: #{tpu_custom_call.1} parent=1 // pred_fallthru
      _
    // Predicated region
    $region54: #{tpu_custom_call.1} parent=1 // pred_check
      _
    $region55: #{tpu_custom_call.1} parent=1 // pred_check_branch
      %122 = sbr.rel (0) target = $region57
    $region56: #{tpu_custom_call.1} parent=1 // pred_region
      %123 = dma.done [#allocation9], 4096
    $region57: #{tpu_custom_call.1} parent=1 // pred_fallthru
      _
    // Predicated region
    $region58: #{tpu_custom_call.1} parent=1 // pred_check
      _
    $region59: #{tpu_custom_call.1} parent=1 // pred_check_branch
      %125 = sbr.rel (0) target = $region61
    $region60: #{tpu_custom_call.1} parent=1 // pred_region
      %126 = dma.done [#allocation12], 8192
    $region61: #{tpu_custom_call.1} parent=1 // pred_fallthru
      _
    // Predicated region
    $region62: #{tpu_custom_call.1} parent=1 // pred_check
      _
    $region63: #{tpu_custom_call.1} parent=1 // pred_check_branch
      %128 = sbr.rel (0) target = $region65
    $region64: #{tpu_custom_call.1} parent=1 // pred_region
      %129 = dma.done [#allocation12], 3072
    $region65: #{tpu_custom_call.1} parent=1 // pred_fallthru
      _
    %p131 = scmp.eq.s32.totalorder 0, 0
    // Predicated region
    $region66: #{tpu_custom_call.1} parent=1 // pred_check
      %p132 = pneg %p131
    $region67: #{tpu_custom_call.1} parent=1 // pred_check_branch
      %134 = sbr.rel (%p132) target = $region69
    $region68: #{tpu_custom_call.1} parent=1 // pred_region
      %v135 = vld [vmem:[#allocation5] sm:$0xff]
      %v136 = vld [vmem:[#allocation5 + $0x8] sm:$0xff]
      %137 = vst [vmem:[#allocation15] sm:$0xff] %v135
      %138 = vst [vmem:[#allocation15 + $0x8] sm:$0xff] %v136
      %v139 = vld [vmem:[#allocation7] sm:$0xff]
      %v140 = vld [vmem:[#allocation7 + $0x8] sm:$0xff]
      %141 = vst [vmem:[#allocation17] sm:$0xff] %v139
      %142 = vst [vmem:[#allocation17 + $0x8] sm:$0xff] %v140
    $region69: #{tpu_custom_call.1} parent=1 // pred_fallthru
      _
    %v143 = vld [vmem:[#allocation2] sm:$0xf]
    %v144 = vld [vmem:[#allocation15] sm:$0xff]
    %v145 = vld [vmem:[#allocation17] sm:$0xff]
    %v146 = vld [vmem:[#allocation8] sm:$0xff]
    %v147 = vld [vmem:[#allocation8 + $0x8] sm:$0xff]
    %v148 = vld [vmem:[#allocation8 + $0x10] sm:$0xff]
    %v149 = vld [vmem:[#allocation8 + $0x18] sm:$0xff]
    %v150 = vld [vmem:[#allocation8 + $0x20] sm:$0xff]
    %v151 = vld [vmem:[#allocation8 + $0x28] sm:$0xff]
    %v152 = vld [vmem:[#allocation8 + $0x30] sm:$0xff]
    %v153 = vld [vmem:[#allocation8 + $0x38] sm:$0xff]
    %v154 = vld [vmem:[#allocation8 + $0x40] sm:$0xff]
    %v155 = vld [vmem:[#allocation8 + $0x48] sm:$0xff]
    %v156 = vld [vmem:[#allocation8 + $0x50] sm:$0xff]
    %v157 = vld [vmem:[#allocation8 + $0x58] sm:$0xff]
    %v158 = vld [vmem:[#allocation8 + $0x60] sm:$0xff]
    %v159 = vld [vmem:[#allocation8 + $0x68] sm:$0xff]
    %v160 = vld [vmem:[#allocation8 + $0x70] sm:$0xff]
    %v161 = vld [vmem:[#allocation8 + $0x78] sm:$0xff]
    %v162 = vpack.c.bf16 %v144, %v144
    %v163 = vld [vmem:[#allocation11] sm:$0xff]
    %v164 = vld [vmem:[#allocation11 + $0x8] sm:$0xff]
    %v165 = vld [vmem:[#allocation11 + $0x10] sm:$0xff]
    %v166 = vld [vmem:[#allocation11 + $0x18] sm:$0xff]
    %v167 = vld [vmem:[#allocation11 + $0x20] sm:$0xff]
    %v168 = vld [vmem:[#allocation11 + $0x28] sm:$0xff]
    %v169 = vld [vmem:[#allocation11 + $0x30] sm:$0xff]
    %v170 = vld [vmem:[#allocation11 + $0x38] sm:$0xff]
    %v171 = vld [vmem:[#allocation11 + $0x40] sm:$0xff]
    %v172 = vld [vmem:[#allocation11 + $0x48] sm:$0xff]
    %v173 = vld [vmem:[#allocation11 + $0x50] sm:$0xff]
    %v174 = vld [vmem:[#allocation11 + $0x58] sm:$0xff]
    %v175 = vld [vmem:[#allocation11 + $0x60] sm:$0xff]
    %v176 = vld [vmem:[#allocation11 + $0x68] sm:$0xff]
    %v177 = vld [vmem:[#allocation11 + $0x70] sm:$0xff]
    %v178 = vld [vmem:[#allocation11 + $0x78] sm:$0xff]
    %v179 = vld [vmem:[#allocation11 + $0x80] sm:$0xff]
    %v180 = vld [vmem:[#allocation11 + $0x88] sm:$0xff]
    %v181 = vld [vmem:[#allocation11 + $0x90] sm:$0xff]
    %v182 = vld [vmem:[#allocation11 + $0x98] sm:$0xff]
    %v183 = vld [vmem:[#allocation11 + $0xa0] sm:$0xff]
    %v184 = vld [vmem:[#allocation11 + $0xa8] sm:$0xff]
    %v185 = vld [vmem:[#allocation11 + $0xb0] sm:$0xff]
    %v186 = vld [vmem:[#allocation11 + $0xb8] sm:$0xff]
    %v187 = vld [vmem:[#allocation11 + $0xc0] sm:$0xff]
    %v188 = vld [vmem:[#allocation11 + $0xc8] sm:$0xff]
    %v189 = vld [vmem:[#allocation11 + $0xd0] sm:$0xff]
    %v190 = vld [vmem:[#allocation11 + $0xd8] sm:$0xff]
    %v191 = vld [vmem:[#allocation11 + $0xe0] sm:$0xff]
    %v192 = vld [vmem:[#allocation11 + $0xe8] sm:$0xff]
    %v193 = vld [vmem:[#allocation11 + $0xf0] sm:$0xff]
    %v194 = vld [vmem:[#allocation11 + $0xf8] sm:$0xff]
    %v227 = vunpack.c.l.b16 %v163
    %v228 = vunpack.c.h.b16 %v163
    %v229 = vunpack.c.l.b16 %v164
    %v230 = vunpack.c.h.b16 %v164
    %v231 = vunpack.c.l.b16 %v165
    %v232 = vunpack.c.h.b16 %v165
    %v233 = vunpack.c.l.b16 %v166
    %v234 = vunpack.c.h.b16 %v166
    %v235 = vunpack.c.l.b16 %v167
    %v236 = vunpack.c.h.b16 %v167
    %v237 = vunpack.c.l.b16 %v168
    %v238 = vunpack.c.h.b16 %v168
    %v239 = vunpack.c.l.b16 %v169
    %v240 = vunpack.c.h.b16 %v169
    %v241 = vunpack.c.l.b16 %v170
    %v242 = vunpack.c.h.b16 %v170
    %v243 = vunpack.c.l.b16 %v171
    %v244 = vunpack.c.h.b16 %v171
    %v245 = vunpack.c.l.b16 %v172
    %v246 = vunpack.c.h.b16 %v172
    %v247 = vunpack.c.l.b16 %v173
    %v248 = vunpack.c.h.b16 %v173
    %v249 = vunpack.c.l.b16 %v174
    %v250 = vunpack.c.h.b16 %v174
    %v251 = vunpack.c.l.b16 %v175
    %v252 = vunpack.c.h.b16 %v175
    %v253 = vunpack.c.l.b16 %v176
    %v254 = vunpack.c.h.b16 %v176
    %v255 = vunpack.c.l.b16 %v177
    %v256 = vunpack.c.h.b16 %v177
    %v257 = vunpack.c.l.b16 %v178
    %v258 = vunpack.c.h.b16 %v178
    %v259 = vunpack.c.l.b16 %v179
    %v260 = vunpack.c.h.b16 %v179
    %v261 = vunpack.c.l.b16 %v180
    %v262 = vunpack.c.h.b16 %v180
    %v263 = vunpack.c.l.b16 %v181
    %v264 = vunpack.c.h.b16 %v181
    %v265 = vunpack.c.l.b16 %v182
    %v266 = vunpack.c.h.b16 %v182
    %v267 = vunpack.c.l.b16 %v183
    %v268 = vunpack.c.h.b16 %v183
    %v269 = vunpack.c.l.b16 %v184
    %v270 = vunpack.c.h.b16 %v184
    %v271 = vunpack.c.l.b16 %v185
    %v272 = vunpack.c.h.b16 %v185
    %v273 = vunpack.c.l.b16 %v186
    %v274 = vunpack.c.h.b16 %v186
    %v275 = vunpack.c.l.b16 %v187
    %v276 = vunpack.c.h.b16 %v187
    %v277 = vunpack.c.l.b16 %v188
    %v278 = vunpack.c.h.b16 %v188
    %v279 = vunpack.c.l.b16 %v189
    %v280 = vunpack.c.h.b16 %v189
    %v281 = vunpack.c.l.b16 %v190
    %v282 = vunpack.c.h.b16 %v190
    %v283 = vunpack.c.l.b16 %v191
    %v284 = vunpack.c.h.b16 %v191
    %v285 = vunpack.c.l.b16 %v192
    %v286 = vunpack.c.h.b16 %v192
    %v287 = vunpack.c.l.b16 %v193
    %v288 = vunpack.c.h.b16 %v193
    %v289 = vunpack.c.l.b16 %v194
    %v290 = vunpack.c.h.b16 %v194
    %v291 = vpack.c.b16 %v231, %v227
    %v292 = vpack.c.b16 %v232, %v228
    %v293 = vpack.c.b16 %v233, %v229
    %v294 = vpack.c.b16 %v234, %v230
    %v295 = vpack.c.b16 %v239, %v235
    %v296 = vpack.c.b16 %v240, %v236
    %v297 = vpack.c.b16 %v241, %v237
    %v298 = vpack.c.b16 %v242, %v238
    %v299 = vpack.c.b16 %v247, %v243
    %v300 = vpack.c.b16 %v248, %v244
    %v301 = vpack.c.b16 %v249, %v245
    %v302 = vpack.c.b16 %v250, %v246
    %v303 = vpack.c.b16 %v255, %v251
    %v304 = vpack.c.b16 %v256, %v252
    %v305 = vpack.c.b16 %v257, %v253
    %v306 = vpack.c.b16 %v258, %v254
    %v307 = vpack.c.b16 %v263, %v259
    %v308 = vpack.c.b16 %v264, %v260
    %v309 = vpack.c.b16 %v265, %v261
    %v310 = vpack.c.b16 %v266, %v262
    %v311 = vpack.c.b16 %v271, %v267
    %v312 = vpack.c.b16 %v272, %v268
    %v313 = vpack.c.b16 %v273, %v269
    %v314 = vpack.c.b16 %v274, %v270
    %v315 = vpack.c.b16 %v279, %v275
    %v316 = vpack.c.b16 %v280, %v276
    %v317 = vpack.c.b16 %v281, %v277
    %v318 = vpack.c.b16 %v282, %v278
    %v319 = vpack.c.b16 %v287, %v283
    %v320 = vpack.c.b16 %v288, %v284
    %v321 = vpack.c.b16 %v289, %v285
    %v322 = vpack.c.b16 %v290, %v286
    %355 = vmatprep.subr.bf16.mxu0 %v292
    %356 = vmatpush1.bf16.msra.mxu0 %v291
    %357 = vmatprep.subr.bf16.mxu0 %v296
    %358 = vmatpush1.bf16.msra.mxu0 %v295
    %359 = vmatprep.subr.bf16.mxu0 %v300
    %360 = vmatpush1.bf16.msra.mxu0 %v299
    %361 = vmatprep.subr.bf16.mxu0 %v304
    %362 = vmatpush1.bf16.msra.mxu0 %v303
    %363 = vmatprep.subr.bf16.mxu0 %v308
    %364 = vmatpush1.bf16.msra.mxu0 %v307
    %365 = vmatprep.subr.bf16.mxu0 %v312
    %366 = vmatpush1.bf16.msra.mxu0 %v311
    %367 = vmatprep.subr.bf16.mxu0 %v316
    %368 = vmatpush1.bf16.msra.mxu0 %v315
    %369 = vmatprep.subr.bf16.mxu0 %v320
    %370 = vmatpush1.bf16.msra.mxu0 %v319
    %371 = vmatprep.subr.bf16.mxu0 0
    %372 = vmatpush1.bf16.msra.mxu0 0
    %373 = vmatprep.subr.bf16.mxu0 0
    %374 = vmatpush1.bf16.msra.mxu0 0
    %375 = vmatprep.subr.bf16.mxu0 0
    %376 = vmatpush1.bf16.msra.mxu0 0
    %377 = vmatprep.subr.bf16.mxu0 0
    %378 = vmatpush1.bf16.msra.mxu0 0
    %379 = vmatprep.subr.bf16.mxu0 0
    %380 = vmatpush1.bf16.msra.mxu0 0
    %381 = vmatprep.subr.bf16.mxu0 0
    %382 = vmatpush1.bf16.msra.mxu0 0
    %383 = vmatprep.subr.bf16.mxu0 0
    %384 = vmatpush1.bf16.msra.mxu0 0
    %385 = vmatprep.subr.bf16.mxu0 0
    %386 = vmatpush1.bf16.msra.mxu0 0
    %387 = vmatprep.mubr.bf16.mxu0 0
    %388 = vmatmul.mubr.bf16.gmra.mrb[0].mxu0 %v162
    %v389 = vpop.f32.mrb[0].mxu0
    %v390 = vadd.f32 0.0, %v389
    %v391 = vpop.f32.mrb[0].mxu0
    %v392 = vadd.f32 0.0, %v391
    %v393 = vpop.f32.mrb[0].mxu0
    %v394 = vpop.f32.mrb[0].mxu0
    %395 = vdwg.mxu0
    %396 = vmatprep.subr.bf16.mxu0 %v294
    %397 = vmatpush1.bf16.msra.mxu0 %v293
    %398 = vmatprep.subr.bf16.mxu0 %v298
    %399 = vmatpush1.bf16.msra.mxu0 %v297
    %400 = vmatprep.subr.bf16.mxu0 %v302
    %401 = vmatpush1.bf16.msra.mxu0 %v301
    %402 = vmatprep.subr.bf16.mxu0 %v306
    %403 = vmatpush1.bf16.msra.mxu0 %v305
    %404 = vmatprep.subr.bf16.mxu0 %v310
    %405 = vmatpush1.bf16.msra.mxu0 %v309
    %406 = vmatprep.subr.bf16.mxu0 %v314
    %407 = vmatpush1.bf16.msra.mxu0 %v313
    %408 = vmatprep.subr.bf16.mxu0 %v318
    %409 = vmatpush1.bf16.msra.mxu0 %v317
    %410 = vmatprep.subr.bf16.mxu0 %v322
    %411 = vmatpush1.bf16.msra.mxu0 %v321
    %412 = vmatprep.subr.bf16.mxu0 0
    %413 = vmatpush1.bf16.msra.mxu0 0
    %414 = vmatprep.subr.bf16.mxu0 0
    %415 = vmatpush1.bf16.msra.mxu0 0
    %416 = vmatprep.subr.bf16.mxu0 0
    %417 = vmatpush1.bf16.msra.mxu0 0
    %418 = vmatprep.subr.bf16.mxu0 0
    %419 = vmatpush1.bf16.msra.mxu0 0
    %420 = vmatprep.subr.bf16.mxu0 0
    %421 = vmatpush1.bf16.msra.mxu0 0
    %422 = vmatprep.subr.bf16.mxu0 0
    %423 = vmatpush1.bf16.msra.mxu0 0
    %424 = vmatprep.subr.bf16.mxu0 0
    %425 = vmatpush1.bf16.msra.mxu0 0
    %426 = vmatprep.subr.bf16.mxu0 0
    %427 = vmatpush1.bf16.msra.mxu0 0
    %428 = vmatprep.mubr.bf16.mxu0 0
    %429 = vmatmul.mubr.bf16.gmra.mrb[0].mxu0 %v162
    %v430 = vpop.f32.mrb[0].mxu0
    %v431 = vadd.f32 0.0, %v430
    %v432 = vpop.f32.mrb[0].mxu0
    %v433 = vadd.f32 0.0, %v432
    %v434 = vpop.f32.mrb[0].mxu0
    %v435 = vpop.f32.mrb[0].mxu0
    %436 = vdwg.mxu0
    %v453 = vunpack.c.l.b16 %v146
    %v454 = vunpack.c.h.b16 %v146
    %v455 = vunpack.c.l.b16 %v147
    %v456 = vunpack.c.h.b16 %v147
    %v457 = vunpack.c.l.b16 %v148
    %v458 = vunpack.c.h.b16 %v148
    %v459 = vunpack.c.l.b16 %v149
    %v460 = vunpack.c.h.b16 %v149
    %v461 = vunpack.c.l.b16 %v150
    %v462 = vunpack.c.h.b16 %v150
    %v463 = vunpack.c.l.b16 %v151
    %v464 = vunpack.c.h.b16 %v151
    %v465 = vunpack.c.l.b16 %v152
    %v466 = vunpack.c.h.b16 %v152
    %v467 = vunpack.c.l.b16 %v153
    %v468 = vunpack.c.h.b16 %v153
    %v469 = vunpack.c.l.b16 %v154
    %v470 = vunpack.c.h.b16 %v154
    %v471 = vunpack.c.l.b16 %v155
    %v472 = vunpack.c.h.b16 %v155
    %v473 = vunpack.c.l.b16 %v156
    %v474 = vunpack.c.h.b16 %v156
    %v475 = vunpack.c.l.b16 %v157
    %v476 = vunpack.c.h.b16 %v157
    %v477 = vunpack.c.l.b16 %v158
    %v478 = vunpack.c.h.b16 %v158
    %v479 = vunpack.c.l.b16 %v159
    %v480 = vunpack.c.h.b16 %v159
    %v481 = vunpack.c.l.b16 %v160
    %v482 = vunpack.c.h.b16 %v160
    %v483 = vunpack.c.l.b16 %v161
    %v484 = vunpack.c.h.b16 %v161
    %v485 = vpack.c.b16 %v457, %v453
    %v486 = vpack.c.b16 %v458, %v454
    %v487 = vpack.c.b16 %v459, %v455
    %v488 = vpack.c.b16 %v460, %v456
    %v489 = vpack.c.b16 %v465, %v461
    %v490 = vpack.c.b16 %v466, %v462
    %v491 = vpack.c.b16 %v467, %v463
    %v492 = vpack.c.b16 %v468, %v464
    %v493 = vpack.c.b16 %v473, %v469
    %v494 = vpack.c.b16 %v474, %v470
    %v495 = vpack.c.b16 %v475, %v471
    %v496 = vpack.c.b16 %v476, %v472
    %v497 = vpack.c.b16 %v481, %v477
    %v498 = vpack.c.b16 %v482, %v478
    %v499 = vpack.c.b16 %v483, %v479
    %v500 = vpack.c.b16 %v484, %v480
    %vm517 = vcmask 523264
    %v519 = vsel %vm517, %v143, 0
    %521 = vmatprep.subr.bf16.mxu0 %v486
    %522 = vmatpush1.bf16.msra.mxu0 %v485
    %523 = vmatprep.subr.bf16.mxu0 %v490
    %524 = vmatpush1.bf16.msra.mxu0 %v489
    %525 = vmatprep.subr.bf16.mxu0 %v494
    %526 = vmatpush1.bf16.msra.mxu0 %v493
    %527 = vmatprep.subr.bf16.mxu0 %v498
    %528 = vmatpush1.bf16.msra.mxu0 %v497
    %529 = vmatprep.subr.bf16.mxu0 0
    %530 = vmatpush1.bf16.msra.mxu0 0
    %531 = vmatprep.subr.bf16.mxu0 0
    %532 = vmatpush1.bf16.msra.mxu0 0
    %533 = vmatprep.subr.bf16.mxu0 0
    %534 = vmatpush1.bf16.msra.mxu0 0
    %535 = vmatprep.subr.bf16.mxu0 0
    %536 = vmatpush1.bf16.msra.mxu0 0
    %537 = vmatprep.subr.bf16.mxu0 0
    %538 = vmatpush1.bf16.msra.mxu0 0
    %539 = vmatprep.subr.bf16.mxu0 0
    %540 = vmatpush1.bf16.msra.mxu0 0
    %541 = vmatprep.subr.bf16.mxu0 0
    %542 = vmatpush1.bf16.msra.mxu0 0
    %543 = vmatprep.subr.bf16.mxu0 0
    %544 = vmatpush1.bf16.msra.mxu0 0
    %545 = vmatprep.subr.bf16.mxu0 0
    %546 = vmatpush1.bf16.msra.mxu0 0
    %547 = vmatprep.subr.bf16.mxu0 0
    %548 = vmatpush1.bf16.msra.mxu0 0
    %549 = vmatprep.subr.bf16.mxu0 0
    %550 = vmatpush1.bf16.msra.mxu0 0
    %551 = vmatprep.subr.bf16.mxu0 0
    %552 = vmatpush1.bf16.msra.mxu0 0
    %553 = vmatprep.mubr.bf16.mxu0 0
    %554 = vmatmul.mubr.bf16.gmra.mrb[0].mxu0 %v519
    %v555 = vpop.f32.mrb[0].mxu0
    %v556 = vadd.f32 %v390, %v555
    %v557 = vpop.f32.mrb[0].mxu0
    %v558 = vadd.f32 %v392, %v557
    %v559 = vpop.f32.mrb[0].mxu0
    %v560 = vpop.f32.mrb[0].mxu0
    %561 = vdwg.mxu0
    %562 = vmatprep.subr.bf16.mxu0 %v488
    %563 = vmatpush1.bf16.msra.mxu0 %v487
    %564 = vmatprep.subr.bf16.mxu0 %v492
    %565 = vmatpush1.bf16.msra.mxu0 %v491
    %566 = vmatprep.subr.bf16.mxu0 %v496
    %567 = vmatpush1.bf16.msra.mxu0 %v495
    %568 = vmatprep.subr.bf16.mxu0 %v500
    %569 = vmatpush1.bf16.msra.mxu0 %v499
    %570 = vmatprep.subr.bf16.mxu0 0
    %571 = vmatpush1.bf16.msra.mxu0 0
    %572 = vmatprep.subr.bf16.mxu0 0
    %573 = vmatpush1.bf16.msra.mxu0 0
    %574 = vmatprep.subr.bf16.mxu0 0
    %575 = vmatpush1.bf16.msra.mxu0 0
    %576 = vmatprep.subr.bf16.mxu0 0
    %577 = vmatpush1.bf16.msra.mxu0 0
    %578 = vmatprep.subr.bf16.mxu0 0
    %579 = vmatpush1.bf16.msra.mxu0 0
    %580 = vmatprep.subr.bf16.mxu0 0
    %581 = vmatpush1.bf16.msra.mxu0 0
    %582 = vmatprep.subr.bf16.mxu0 0
    %583 = vmatpush1.bf16.msra.mxu0 0
    %584 = vmatprep.subr.bf16.mxu0 0
    %585 = vmatpush1.bf16.msra.mxu0 0
    %586 = vmatprep.subr.bf16.mxu0 0
    %587 = vmatpush1.bf16.msra.mxu0 0
    %588 = vmatprep.subr.bf16.mxu0 0
    %589 = vmatpush1.bf16.msra.mxu0 0
    %590 = vmatprep.subr.bf16.mxu0 0
    %591 = vmatpush1.bf16.msra.mxu0 0
    %592 = vmatprep.subr.bf16.mxu0 0
    %593 = vmatpush1.bf16.msra.mxu0 0
    %594 = vmatprep.mubr.bf16.mxu0 0
    %595 = vmatmul.mubr.bf16.gmra.mrb[0].mxu0 %v519
    %v596 = vpop.f32.mrb[0].mxu0
    %v597 = vadd.f32 %v431, %v596
    %v598 = vpop.f32.mrb[0].mxu0
    %v599 = vadd.f32 %v433, %v598
    %v600 = vpop.f32.mrb[0].mxu0
    %v601 = vpop.f32.mrb[0].mxu0
    %602 = vdwg.mxu0
    %v603 = vld [vmem:[%s6] sm:$0xf]
    %v605 = vlaneseq
    %v606 = vshrl.u32 %v605, 7
    %v607 = vsub.s32 0, %v606
    %v608 = vrot.slane %v603, %v607
    %v609 = vlaneseq
    %v610 = vshrl.u32 %v609, 7
    %v611 = vsub.s32 1, %v610
    %v612 = vrot.slane %v603, %v611
    %v613 = vlaneseq
    %v614 = vshrl.u32 %v613, 7
    %v615 = vsub.s32 2, %v614
    %v616 = vrot.slane %v603, %v615
    %v617 = vlaneseq
    %v618 = vshrl.u32 %v617, 7
    %v619 = vsub.s32 3, %v618
    %v620 = vrot.slane %v603, %v619
    %v625 = vadd.f32 %v556, %v608
    %v626 = vadd.f32 %v558, %v612
    %v627 = vadd.f32 %v597, %v616
    %v628 = vadd.f32 %v599, %v620
    %v629 = vmul.f32 %v625, 0.5
    %v630 = vtanh.pop %v629
    %v631 = vadd.f32 %v630, 1.0
    %v632 = vmul.f32 %v631, 0.5
    %v633 = vmul.f32 %v626, 0.5
    %v634 = vtanh.pop %v633
    %v635 = vadd.f32 %v634, 1.0
    %v636 = vmul.f32 %v635, 0.5
    %v637 = vtanh.pop %v627
    %v638 = vmul.f32 %v628, 0.5
    %v639 = vtanh.pop %v638
    %v640 = vadd.f32 %v639, 1.0
    %v641 = vmul.f32 %v640, 0.5
    %v642 = vmul.f32 %v636, %v145
    %v643 = vmul.f32 %v632, %v637
    %v644 = vadd.f32 %v642, %v643
    %v645 = vtanh.pop %v644
    %v646 = vmul.f32 %v641, %v645
    %647 = vst [vmem:[#allocation15] sm:$0xff] %v646
    %648 = vst [vmem:[#allocation17] sm:$0xff] %v644
    %v649 = vpack.c.bf16 %v646, %v646
    %s650 = scalar_lea.vmem [#allocation15], 8
    %v651 = vld [vmem:[%s650] sm:$0xff]
    %s652 = scalar_lea.vmem [#allocation17], 8
    %v653 = vld [vmem:[%s652] sm:$0xff]
    %v654 = vld [vmem:[#allocation10] sm:$0xff]
    %v655 = vld [vmem:[#allocation10 + $0x8] sm:$0xff]
    %v656 = vld [vmem:[#allocation10 + $0x10] sm:$0xff]
    %v657 = vld [vmem:[#allocation10 + $0x18] sm:$0xff]
    %v658 = vld [vmem:[#allocation10 + $0x20] sm:$0xff]
    %v659 = vld [vmem:[#allocation10 + $0x28] sm:$0xff]
    %v660 = vld [vmem:[#allocation10 + $0x30] sm:$0xff]
    %v661 = vld [vmem:[#allocation10 + $0x38] sm:$0xff]
    %v662 = vld [vmem:[#allocation10 + $0x40] sm:$0xff]
    %v663 = vld [vmem:[#allocation10 + $0x48] sm:$0xff]
    %v664 = vld [vmem:[#allocation10 + $0x50] sm:$0xff]
    %v665 = vld [vmem:[#allocation10 + $0x58] sm:$0xff]
    %v666 = vld [vmem:[#allocation10 + $0x60] sm:$0xff]
    %v667 = vld [vmem:[#allocation10 + $0x68] sm:$0xff]
    %v668 = vld [vmem:[#allocation10 + $0x70] sm:$0xff]
    %v669 = vld [vmem:[#allocation10 + $0x78] sm:$0xff]
    %v670 = vld [vmem:[#allocation10 + $0x80] sm:$0xff]
    %v671 = vld [vmem:[#allocation10 + $0x88] sm:$0xff]
    %v672 = vld [vmem:[#allocation10 + $0x90] sm:$0xff]
    %v673 = vld [vmem:[#allocation10 + $0x98] sm:$0xff]
    %v674 = vld [vmem:[#allocation10 + $0xa0] sm:$0xff]
    %v675 = vld [vmem:[#allocation10 + $0xa8] sm:$0xff]
    %v676 = vld [vmem:[#allocation10 + $0xb0] sm:$0xff]
    %v677 = vld [vmem:[#allocation10 + $0xb8] sm:$0xff]
    %v678 = vld [vmem:[#allocation10 + $0xc0] sm:$0xff]
    %v679 = vld [vmem:[#allocation10 + $0xc8] sm:$0xff]
    %v680 = vld [vmem:[#allocation10 + $0xd0] sm:$0xff]
    %v681 = vld [vmem:[#allocation10 + $0xd8] sm:$0xff]
    %v682 = vld [vmem:[#allocation10 + $0xe0] sm:$0xff]
    %v683 = vld [vmem:[#allocation10 + $0xe8] sm:$0xff]
    %v684 = vld [vmem:[#allocation10 + $0xf0] sm:$0xff]
    %v685 = vld [vmem:[#allocation10 + $0xf8] sm:$0xff]
    %v686 = vpack.c.bf16 %v651, %v651
    %s687 = scalar_lea.vmem [#allocation11], 256
    %v688 = vld [vmem:[%s687] sm:$0xff]
    %v689 = vld [vmem:[%s687 + $0x8] sm:$0xff]
    %v690 = vld [vmem:[%s687 + $0x10] sm:$0xff]
    %v691 = vld [vmem:[%s687 + $0x18] sm:$0xff]
    %v692 = vld [vmem:[%s687 + $0x20] sm:$0xff]
    %v693 = vld [vmem:[%s687 + $0x28] sm:$0xff]
    %v694 = vld [vmem:[%s687 + $0x30] sm:$0xff]
    %v695 = vld [vmem:[%s687 + $0x38] sm:$0xff]
    %v696 = vld [vmem:[%s687 + $0x40] sm:$0xff]
    %v697 = vld [vmem:[%s687 + $0x48] sm:$0xff]
    %v698 = vld [vmem:[%s687 + $0x50] sm:$0xff]
    %v699 = vld [vmem:[%s687 + $0x58] sm:$0xff]
    %v700 = vld [vmem:[%s687 + $0x60] sm:$0xff]
    %v701 = vld [vmem:[%s687 + $0x68] sm:$0xff]
    %v702 = vld [vmem:[%s687 + $0x70] sm:$0xff]
    %v703 = vld [vmem:[%s687 + $0x78] sm:$0xff]
    %v704 = vld [vmem:[%s687 + $0x80] sm:$0xff]
    %v705 = vld [vmem:[%s687 + $0x88] sm:$0xff]
    %v706 = vld [vmem:[%s687 + $0x90] sm:$0xff]
    %v707 = vld [vmem:[%s687 + $0x98] sm:$0xff]
    %v708 = vld [vmem:[%s687 + $0xa0] sm:$0xff]
    %v709 = vld [vmem:[%s687 + $0xa8] sm:$0xff]
    %v710 = vld [vmem:[%s687 + $0xb0] sm:$0xff]
    %v711 = vld [vmem:[%s687 + $0xb8] sm:$0xff]
    %v712 = vld [vmem:[%s687 + $0xc0] sm:$0xff]
    %v713 = vld [vmem:[%s687 + $0xc8] sm:$0xff]
    %v714 = vld [vmem:[%s687 + $0xd0] sm:$0xff]
    %v715 = vld [vmem:[%s687 + $0xd8] sm:$0xff]
    %v716 = vld [vmem:[%s687 + $0xe0] sm:$0xff]
    %v717 = vld [vmem:[%s687 + $0xe8] sm:$0xff]
    %v718 = vld [vmem:[%s687 + $0xf0] sm:$0xff]
    %v719 = vld [vmem:[%s687 + $0xf8] sm:$0xff]
    %v752 = vunpack.c.l.b16 %v688
    %v753 = vunpack.c.h.b16 %v688
    %v754 = vunpack.c.l.b16 %v689
    %v755 = vunpack.c.h.b16 %v689
    %v756 = vunpack.c.l.b16 %v690
    %v757 = vunpack.c.h.b16 %v690
    %v758 = vunpack.c.l.b16 %v691
    %v759 = vunpack.c.h.b16 %v691
    %v760 = vunpack.c.l.b16 %v692
    %v761 = vunpack.c.h.b16 %v692
    %v762 = vunpack.c.l.b16 %v693
    %v763 = vunpack.c.h.b16 %v693
    %v764 = vunpack.c.l.b16 %v694
    %v765 = vunpack.c.h.b16 %v694
    %v766 = vunpack.c.l.b16 %v695
    %v767 = vunpack.c.h.b16 %v695
    %v768 = vunpack.c.l.b16 %v696
    %v769 = vunpack.c.h.b16 %v696
    %v770 = vunpack.c.l.b16 %v697
    %v771 = vunpack.c.h.b16 %v697
    %v772 = vunpack.c.l.b16 %v698
    %v773 = vunpack.c.h.b16 %v698
    %v774 = vunpack.c.l.b16 %v699
    %v775 = vunpack.c.h.b16 %v699
    %v776 = vunpack.c.l.b16 %v700
    %v777 = vunpack.c.h.b16 %v700
    %v778 = vunpack.c.l.b16 %v701
    %v779 = vunpack.c.h.b16 %v701
    %v780 = vunpack.c.l.b16 %v702
    %v781 = vunpack.c.h.b16 %v702
    %v782 = vunpack.c.l.b16 %v703
    %v783 = vunpack.c.h.b16 %v703
    %v784 = vunpack.c.l.b16 %v704
    %v785 = vunpack.c.h.b16 %v704
    %v786 = vunpack.c.l.b16 %v705
    %v787 = vunpack.c.h.b16 %v705
    %v788 = vunpack.c.l.b16 %v706
    %v789 = vunpack.c.h.b16 %v706
    %v790 = vunpack.c.l.b16 %v707
    %v791 = vunpack.c.h.b16 %v707
    %v792 = vunpack.c.l.b16 %v708
    %v793 = vunpack.c.h.b16 %v708
    %v794 = vunpack.c.l.b16 %v709
    %v795 = vunpack.c.h.b16 %v709
    %v796 = vunpack.c.l.b16 %v710
    %v797 = vunpack.c.h.b16 %v710
    %v798 = vunpack.c.l.b16 %v711
    %v799 = vunpack.c.h.b16 %v711
    %v800 = vunpack.c.l.b16 %v712
    %v801 = vunpack.c.h.b16 %v712
    %v802 = vunpack.c.l.b16 %v713
    %v803 = vunpack.c.h.b16 %v713
    %v804 = vunpack.c.l.b16 %v714
    %v805 = vunpack.c.h.b16 %v714
    %v806 = vunpack.c.l.b16 %v715
    %v807 = vunpack.c.h.b16 %v715
    %v808 = vunpack.c.l.b16 %v716
    %v809 = vunpack.c.h.b16 %v716
    %v810 = vunpack.c.l.b16 %v717
    %v811 = vunpack.c.h.b16 %v717
    %v812 = vunpack.c.l.b16 %v718
    %v813 = vunpack.c.h.b16 %v718
    %v814 = vunpack.c.l.b16 %v719
    %v815 = vunpack.c.h.b16 %v719
    %v816 = vpack.c.b16 %v756, %v752
    %v817 = vpack.c.b16 %v757, %v753
    %v818 = vpack.c.b16 %v758, %v754
    %v819 = vpack.c.b16 %v759, %v755
    %v820 = vpack.c.b16 %v764, %v760
    %v821 = vpack.c.b16 %v765, %v761
    %v822 = vpack.c.b16 %v766, %v762
    %v823 = vpack.c.b16 %v767, %v763
    %v824 = vpack.c.b16 %v772, %v768
    %v825 = vpack.c.b16 %v773, %v769
    %v826 = vpack.c.b16 %v774, %v770
    %v827 = vpack.c.b16 %v775, %v771
    %v828 = vpack.c.b16 %v780, %v776
    %v829 = vpack.c.b16 %v781, %v777
    %v830 = vpack.c.b16 %v782, %v778
    %v831 = vpack.c.b16 %v783, %v779
    %v832 = vpack.c.b16 %v788, %v784
    %v833 = vpack.c.b16 %v789, %v785
    %v834 = vpack.c.b16 %v790, %v786
    %v835 = vpack.c.b16 %v791, %v787
    %v836 = vpack.c.b16 %v796, %v792
    %v837 = vpack.c.b16 %v797, %v793
    %v838 = vpack.c.b16 %v798, %v794
    %v839 = vpack.c.b16 %v799, %v795
    %v840 = vpack.c.b16 %v804, %v800
    %v841 = vpack.c.b16 %v805, %v801
    %v842 = vpack.c.b16 %v806, %v802
    %v843 = vpack.c.b16 %v807, %v803
    %v844 = vpack.c.b16 %v812, %v808
    %v845 = vpack.c.b16 %v813, %v809
    %v846 = vpack.c.b16 %v814, %v810
    %v847 = vpack.c.b16 %v815, %v811
    %880 = vmatprep.subr.bf16.mxu0 %v817
    %881 = vmatpush1.bf16.msra.mxu0 %v816
    %882 = vmatprep.subr.bf16.mxu0 %v821
    %883 = vmatpush1.bf16.msra.mxu0 %v820
    %884 = vmatprep.subr.bf16.mxu0 %v825
    %885 = vmatpush1.bf16.msra.mxu0 %v824
    %886 = vmatprep.subr.bf16.mxu0 %v829
    %887 = vmatpush1.bf16.msra.mxu0 %v828
    %888 = vmatprep.subr.bf16.mxu0 %v833
    %889 = vmatpush1.bf16.msra.mxu0 %v832
    %890 = vmatprep.subr.bf16.mxu0 %v837
    %891 = vmatpush1.bf16.msra.mxu0 %v836
    %892 = vmatprep.subr.bf16.mxu0 %v841
    %893 = vmatpush1.bf16.msra.mxu0 %v840
    %894 = vmatprep.subr.bf16.mxu0 %v845
    %895 = vmatpush1.bf16.msra.mxu0 %v844
    %896 = vmatprep.subr.bf16.mxu0 0
    %897 = vmatpush1.bf16.msra.mxu0 0
    %898 = vmatprep.subr.bf16.mxu0 0
    %899 = vmatpush1.bf16.msra.mxu0 0
    %900 = vmatprep.subr.bf16.mxu0 0
    %901 = vmatpush1.bf16.msra.mxu0 0
    %902 = vmatprep.subr.bf16.mxu0 0
    %903 = vmatpush1.bf16.msra.mxu0 0
    %904 = vmatprep.subr.bf16.mxu0 0
    %905 = vmatpush1.bf16.msra.mxu0 0
    %906 = vmatprep.subr.bf16.mxu0 0
    %907 = vmatpush1.bf16.msra.mxu0 0
    %908 = vmatprep.subr.bf16.mxu0 0
    %909 = vmatpush1.bf16.msra.mxu0 0
    %910 = vmatprep.subr.bf16.mxu0 0
    %911 = vmatpush1.bf16.msra.mxu0 0
    %912 = vmatprep.mubr.bf16.mxu0 0
    %913 = vmatmul.mubr.bf16.gmra.mrb[0].mxu0 %v686
    %v914 = vpop.f32.mrb[0].mxu0
    %v915 = vadd.f32 0.0, %v914
    %v916 = vpop.f32.mrb[0].mxu0
    %v917 = vadd.f32 0.0, %v916
    %v918 = vpop.f32.mrb[0].mxu0
    %v919 = vpop.f32.mrb[0].mxu0
    %920 = vdwg.mxu0
    %921 = vmatprep.subr.bf16.mxu0 %v819
    %922 = vmatpush1.bf16.msra.mxu0 %v818
    %923 = vmatprep.subr.bf16.mxu0 %v823
    %924 = vmatpush1.bf16.msra.mxu0 %v822
    %925 = vmatprep.subr.bf16.mxu0 %v827
    %926 = vmatpush1.bf16.msra.mxu0 %v826
    %927 = vmatprep.subr.bf16.mxu0 %v831
    %928 = vmatpush1.bf16.msra.mxu0 %v830
    %929 = vmatprep.subr.bf16.mxu0 %v835
    %930 = vmatpush1.bf16.msra.mxu0 %v834
    %931 = vmatprep.subr.bf16.mxu0 %v839
    %932 = vmatpush1.bf16.msra.mxu0 %v838
    %933 = vmatprep.subr.bf16.mxu0 %v843
    %934 = vmatpush1.bf16.msra.mxu0 %v842
    %935 = vmatprep.subr.bf16.mxu0 %v847
    %936 = vmatpush1.bf16.msra.mxu0 %v846
    %937 = vmatprep.subr.bf16.mxu0 0
    %938 = vmatpush1.bf16.msra.mxu0 0
    %939 = vmatprep.subr.bf16.mxu0 0
    %940 = vmatpush1.bf16.msra.mxu0 0
    %941 = vmatprep.subr.bf16.mxu0 0
    %942 = vmatpush1.bf16.msra.mxu0 0
    %943 = vmatprep.subr.bf16.mxu0 0
    %944 = vmatpush1.bf16.msra.mxu0 0
    %945 = vmatprep.subr.bf16.mxu0 0
    %946 = vmatpush1.bf16.msra.mxu0 0
    %947 = vmatprep.subr.bf16.mxu0 0
    %948 = vmatpush1.bf16.msra.mxu0 0
    %949 = vmatprep.subr.bf16.mxu0 0
    %950 = vmatpush1.bf16.msra.mxu0 0
    %951 = vmatprep.subr.bf16.mxu0 0
    %952 = vmatpush1.bf16.msra.mxu0 0
    %953 = vmatprep.mubr.bf16.mxu0 0
    %954 = vmatmul.mubr.bf16.gmra.mrb[0].mxu0 %v686
    %v955 = vpop.f32.mrb[0].mxu0
    %v956 = vadd.f32 0.0, %v955
    %v957 = vpop.f32.mrb[0].mxu0
    %v958 = vadd.f32 0.0, %v957
    %v959 = vpop.f32.mrb[0].mxu0
    %v960 = vpop.f32.mrb[0].mxu0
    %961 = vdwg.mxu0
    %v994 = vunpack.c.l.b16 %v654
    %v995 = vunpack.c.h.b16 %v654
    %v996 = vunpack.c.l.b16 %v655
    %v997 = vunpack.c.h.b16 %v655
    %v998 = vunpack.c.l.b16 %v656
    %v999 = vunpack.c.h.b16 %v656
    %v1000 = vunpack.c.l.b16 %v657
    %v1001 = vunpack.c.h.b16 %v657
    %v1002 = vunpack.c.l.b16 %v658
    %v1003 = vunpack.c.h.b16 %v658
    %v1004 = vunpack.c.l.b16 %v659
    %v1005 = vunpack.c.h.b16 %v659
    %v1006 = vunpack.c.l.b16 %v660
    %v1007 = vunpack.c.h.b16 %v660
    %v1008 = vunpack.c.l.b16 %v661
    %v1009 = vunpack.c.h.b16 %v661
    %v1010 = vunpack.c.l.b16 %v662
    %v1011 = vunpack.c.h.b16 %v662
    %v1012 = vunpack.c.l.b16 %v663
    %v1013 = vunpack.c.h.b16 %v663
    %v1014 = vunpack.c.l.b16 %v664
    %v1015 = vunpack.c.h.b16 %v664
    %v1016 = vunpack.c.l.b16 %v665
    %v1017 = vunpack.c.h.b16 %v665
    %v1018 = vunpack.c.l.b16 %v666
    %v1019 = vunpack.c.h.b16 %v666
    %v1020 = vunpack.c.l.b16 %v667
    %v1021 = vunpack.c.h.b16 %v667
    %v1022 = vunpack.c.l.b16 %v668
    %v1023 = vunpack.c.h.b16 %v668
    %v1024 = vunpack.c.l.b16 %v669
    %v1025 = vunpack.c.h.b16 %v669
    %v1026 = vunpack.c.l.b16 %v670
    %v1027 = vunpack.c.h.b16 %v670
    %v1028 = vunpack.c.l.b16 %v671
    %v1029 = vunpack.c.h.b16 %v671
    %v1030 = vunpack.c.l.b16 %v672
    %v1031 = vunpack.c.h.b16 %v672
    %v1032 = vunpack.c.l.b16 %v673
    %v1033 = vunpack.c.h.b16 %v673
    %v1034 = vunpack.c.l.b16 %v674
    %v1035 = vunpack.c.h.b16 %v674
    %v1036 = vunpack.c.l.b16 %v675
    %v1037 = vunpack.c.h.b16 %v675
    %v1038 = vunpack.c.l.b16 %v676
    %v1039 = vunpack.c.h.b16 %v676
    %v1040 = vunpack.c.l.b16 %v677
    %v1041 = vunpack.c.h.b16 %v677
    %v1042 = vunpack.c.l.b16 %v678
    %v1043 = vunpack.c.h.b16 %v678
    %v1044 = vunpack.c.l.b16 %v679
    %v1045 = vunpack.c.h.b16 %v679
    %v1046 = vunpack.c.l.b16 %v680
    %v1047 = vunpack.c.h.b16 %v680
    %v1048 = vunpack.c.l.b16 %v681
    %v1049 = vunpack.c.h.b16 %v681
    %v1050 = vunpack.c.l.b16 %v682
    %v1051 = vunpack.c.h.b16 %v682
    %v1052 = vunpack.c.l.b16 %v683
    %v1053 = vunpack.c.h.b16 %v683
    %v1054 = vunpack.c.l.b16 %v684
    %v1055 = vunpack.c.h.b16 %v684
    %v1056 = vunpack.c.l.b16 %v685
    %v1057 = vunpack.c.h.b16 %v685
    %v1058 = vpack.c.b16 %v998, %v994
    %v1059 = vpack.c.b16 %v999, %v995
    %v1060 = vpack.c.b16 %v1000, %v996
    %v1061 = vpack.c.b16 %v1001, %v997
    %v1062 = vpack.c.b16 %v1006, %v1002
    %v1063 = vpack.c.b16 %v1007, %v1003
    %v1064 = vpack.c.b16 %v1008, %v1004
    %v1065 = vpack.c.b16 %v1009, %v1005
    %v1066 = vpack.c.b16 %v1014, %v1010
    %v1067 = vpack.c.b16 %v1015, %v1011
    %v1068 = vpack.c.b16 %v1016, %v1012
    %v1069 = vpack.c.b16 %v1017, %v1013
    %v1070 = vpack.c.b16 %v1022, %v1018
    %v1071 = vpack.c.b16 %v1023, %v1019
    %v1072 = vpack.c.b16 %v1024, %v1020
    %v1073 = vpack.c.b16 %v1025, %v1021
    %v1074 = vpack.c.b16 %v1030, %v1026
    %v1075 = vpack.c.b16 %v1031, %v1027
    %v1076 = vpack.c.b16 %v1032, %v1028
    %v1077 = vpack.c.b16 %v1033, %v1029
    %v1078 = vpack.c.b16 %v1038, %v1034
    %v1079 = vpack.c.b16 %v1039, %v1035
    %v1080 = vpack.c.b16 %v1040, %v1036
    %v1081 = vpack.c.b16 %v1041, %v1037
    %v1082 = vpack.c.b16 %v1046, %v1042
    %v1083 = vpack.c.b16 %v1047, %v1043
    %v1084 = vpack.c.b16 %v1048, %v1044
    %v1085 = vpack.c.b16 %v1049, %v1045
    %v1086 = vpack.c.b16 %v1054, %v1050
    %v1087 = vpack.c.b16 %v1055, %v1051
    %v1088 = vpack.c.b16 %v1056, %v1052
    %v1089 = vpack.c.b16 %v1057, %v1053
    %1122 = vmatprep.subr.bf16.mxu0 %v1059
    %1123 = vmatpush1.bf16.msra.mxu0 %v1058
    %1124 = vmatprep.subr.bf16.mxu0 %v1063
    %1125 = vmatpush1.bf16.msra.mxu0 %v1062
    %1126 = vmatprep.subr.bf16.mxu0 %v1067
    %1127 = vmatpush1.bf16.msra.mxu0 %v1066
    %1128 = vmatprep.subr.bf16.mxu0 %v1071
    %1129 = vmatpush1.bf16.msra.mxu0 %v1070
    %1130 = vmatprep.subr.bf16.mxu0 %v1075
    %1131 = vmatpush1.bf16.msra.mxu0 %v1074
    %1132 = vmatprep.subr.bf16.mxu0 %v1079
    %1133 = vmatpush1.bf16.msra.mxu0 %v1078
    %1134 = vmatprep.subr.bf16.mxu0 %v1083
    %1135 = vmatpush1.bf16.msra.mxu0 %v1082
    %1136 = vmatprep.subr.bf16.mxu0 %v1087
    %1137 = vmatpush1.bf16.msra.mxu0 %v1086
    %1138 = vmatprep.subr.bf16.mxu0 0
    %1139 = vmatpush1.bf16.msra.mxu0 0
    %1140 = vmatprep.subr.bf16.mxu0 0
    %1141 = vmatpush1.bf16.msra.mxu0 0
    %1142 = vmatprep.subr.bf16.mxu0 0
    %1143 = vmatpush1.bf16.msra.mxu0 0
    %1144 = vmatprep.subr.bf16.mxu0 0
    %1145 = vmatpush1.bf16.msra.mxu0 0
    %1146 = vmatprep.subr.bf16.mxu0 0
    %1147 = vmatpush1.bf16.msra.mxu0 0
    %1148 = vmatprep.subr.bf16.mxu0 0
    %1149 = vmatpush1.bf16.msra.mxu0 0
    %1150 = vmatprep.subr.bf16.mxu0 0
    %1151 = vmatpush1.bf16.msra.mxu0 0
    %1152 = vmatprep.subr.bf16.mxu0 0
    %1153 = vmatpush1.bf16.msra.mxu0 0
    %1154 = vmatprep.mubr.bf16.mxu0 0
    %1155 = vmatmul.mubr.bf16.gmra.mrb[0].mxu0 %v649
    %v1156 = vpop.f32.mrb[0].mxu0
    %v1157 = vadd.f32 %v915, %v1156
    %v1158 = vpop.f32.mrb[0].mxu0
    %v1159 = vadd.f32 %v917, %v1158
    %v1160 = vpop.f32.mrb[0].mxu0
    %v1161 = vpop.f32.mrb[0].mxu0
    %1162 = vdwg.mxu0
    %1163 = vmatprep.subr.bf16.mxu0 %v1061
    %1164 = vmatpush1.bf16.msra.mxu0 %v1060
    %1165 = vmatprep.subr.bf16.mxu0 %v1065
    %1166 = vmatpush1.bf16.msra.mxu0 %v1064
    %1167 = vmatprep.subr.bf16.mxu0 %v1069
    %1168 = vmatpush1.bf16.msra.mxu0 %v1068
    %1169 = vmatprep.subr.bf16.mxu0 %v1073
    %1170 = vmatpush1.bf16.msra.mxu0 %v1072
    %1171 = vmatprep.subr.bf16.mxu0 %v1077
    %1172 = vmatpush1.bf16.msra.mxu0 %v1076
    %1173 = vmatprep.subr.bf16.mxu0 %v1081
    %1174 = vmatpush1.bf16.msra.mxu0 %v1080
    %1175 = vmatprep.subr.bf16.mxu0 %v1085
    %1176 = vmatpush1.bf16.msra.mxu0 %v1084
    %1177 = vmatprep.subr.bf16.mxu0 %v1089
    %1178 = vmatpush1.bf16.msra.mxu0 %v1088
    %1179 = vmatprep.subr.bf16.mxu0 0
    %1180 = vmatpush1.bf16.msra.mxu0 0
    %1181 = vmatprep.subr.bf16.mxu0 0
    %1182 = vmatpush1.bf16.msra.mxu0 0
    %1183 = vmatprep.subr.bf16.mxu0 0
    %1184 = vmatpush1.bf16.msra.mxu0 0
    %1185 = vmatprep.subr.bf16.mxu0 0
    %1186 = vmatpush1.bf16.msra.mxu0 0
    %1187 = vmatprep.subr.bf16.mxu0 0
    %1188 = vmatpush1.bf16.msra.mxu0 0
    %1189 = vmatprep.subr.bf16.mxu0 0
    %1190 = vmatpush1.bf16.msra.mxu0 0
    %1191 = vmatprep.subr.bf16.mxu0 0
    %1192 = vmatpush1.bf16.msra.mxu0 0
    %1193 = vmatprep.subr.bf16.mxu0 0
    %1194 = vmatpush1.bf16.msra.mxu0 0
    %1195 = vmatprep.mubr.bf16.mxu0 0
    %1196 = vmatmul.mubr.bf16.gmra.mrb[0].mxu0 %v649
    %v1197 = vpop.f32.mrb[0].mxu0
    %v1198 = vadd.f32 %v956, %v1197
    %v1199 = vpop.f32.mrb[0].mxu0
    %v1200 = vadd.f32 %v958, %v1199
    %v1201 = vpop.f32.mrb[0].mxu0
    %v1202 = vpop.f32.mrb[0].mxu0
    %1203 = vdwg.mxu0
    %s1204 = scalar_lea.vmem %s6, 4
    %v1205 = vld [vmem:[%s1204] sm:$0xf]
    %v1207 = vlaneseq
    %v1208 = vshrl.u32 %v1207, 7
    %v1209 = vsub.s32 0, %v1208
    %v1210 = vrot.slane %v1205, %v1209
    %v1211 = vlaneseq
    %v1212 = vshrl.u32 %v1211, 7
    %v1213 = vsub.s32 1, %v1212
    %v1214 = vrot.slane %v1205, %v1213
    %v1215 = vlaneseq
    %v1216 = vshrl.u32 %v1215, 7
    %v1217 = vsub.s32 2, %v1216
    %v1218 = vrot.slane %v1205, %v1217
    %v1219 = vlaneseq
    %v1220 = vshrl.u32 %v1219, 7
    %v1221 = vsub.s32 3, %v1220
    %v1222 = vrot.slane %v1205, %v1221
    %v1227 = vadd.f32 %v1157, %v1210
    %v1228 = vadd.f32 %v1159, %v1214
    %v1229 = vadd.f32 %v1198, %v1218
    %v1230 = vadd.f32 %v1200, %v1222
    %v1231 = vmul.f32 %v1227, 0.5
    %v1232 = vtanh.pop %v1231
    %v1233 = vadd.f32 %v1232, 1.0
    %v1234 = vmul.f32 %v1233, 0.5
    %v1235 = vmul.f32 %v1228, 0.5
    %v1236 = vtanh.pop %v1235
    %v1237 = vadd.f32 %v1236, 1.0
    %v1238 = vmul.f32 %v1237, 0.5
    %v1239 = vtanh.pop %v1229
    %v1240 = vmul.f32 %v1230, 0.5
    %v1241 = vtanh.pop %v1240
    %v1242 = vadd.f32 %v1241, 1.0
    %v1243 = vmul.f32 %v1242, 0.5
    %v1244 = vmul.f32 %v1238, %v653
    %v1245 = vmul.f32 %v1234, %v1239
    %v1246 = vadd.f32 %v1244, %v1245
    %v1247 = vtanh.pop %v1246
    %v1248 = vmul.f32 %v1243, %v1247
    %1249 = vst [vmem:[%s650] sm:$0xff] %v1248
    %1250 = vst [vmem:[%s652] sm:$0xff] %v1246
    %v1251 = vpack.c.bf16 %v1248, %v1248
    %v1252 = vld [vmem:[#allocation13] sm:$0xff]
    %v1253 = vld [vmem:[#allocation13 + $0x8] sm:$0xff]
    %v1254 = vld [vmem:[#allocation13 + $0x10] sm:$0xff]
    %v1255 = vld [vmem:[#allocation13 + $0x18] sm:$0xff]
    %v1256 = vld [vmem:[#allocation13 + $0x20] sm:$0xff]
    %v1257 = vld [vmem:[#allocation13 + $0x28] sm:$0xff]
    %v1258 = vld [vmem:[#allocation13 + $0x30] sm:$0xff]
    %v1259 = vld [vmem:[#allocation13 + $0x38] sm:$0xff]
    %v1260 = vld [vmem:[#allocation13 + $0x40] sm:$0xff]
    %v1261 = vld [vmem:[#allocation13 + $0x48] sm:$0xff]
    %v1262 = vld [vmem:[#allocation13 + $0x50] sm:$0xff]
    %v1263 = vld [vmem:[#allocation13 + $0x58] sm:$0xff]
    %v1264 = vld [vmem:[#allocation13 + $0x60] sm:$0xff]
    %v1265 = vld [vmem:[#allocation13 + $0x68] sm:$0xff]
    %v1266 = vld [vmem:[#allocation13 + $0x70] sm:$0xff]
    %v1267 = vld [vmem:[#allocation13 + $0x78] sm:$0xff]
    %v1268 = vld [vmem:[#allocation13 + $0x80] sm:$0xff]
    %v1269 = vld [vmem:[#allocation13 + $0x88] sm:$0xff]
    %v1270 = vld [vmem:[#allocation13 + $0x90] sm:$0xff]
    %v1271 = vld [vmem:[#allocation13 + $0x98] sm:$0xff]
    %v1272 = vld [vmem:[#allocation13 + $0xa0] sm:$0xff]
    %v1273 = vld [vmem:[#allocation13 + $0xa8] sm:$0xff]
    %v1274 = vld [vmem:[#allocation13 + $0xb0] sm:$0xff]
    %v1275 = vld [vmem:[#allocation13 + $0xb8] sm:$0xff]
    %v1292 = vunpack.c.l.b16 %v1260
    %v1293 = vunpack.c.h.b16 %v1260
    %v1294 = vunpack.c.l.b16 %v1261
    %v1295 = vunpack.c.h.b16 %v1261
    %v1296 = vunpack.c.l.b16 %v1262
    %v1297 = vunpack.c.h.b16 %v1262
    %v1298 = vunpack.c.l.b16 %v1263
    %v1299 = vunpack.c.h.b16 %v1263
    %v1300 = vunpack.c.l.b16 %v1264
    %v1301 = vunpack.c.h.b16 %v1264
    %v1302 = vunpack.c.l.b16 %v1265
    %v1303 = vunpack.c.h.b16 %v1265
    %v1304 = vunpack.c.l.b16 %v1266
    %v1305 = vunpack.c.h.b16 %v1266
    %v1306 = vunpack.c.l.b16 %v1267
    %v1307 = vunpack.c.h.b16 %v1267
    %v1308 = vunpack.c.l.b16 %v1268
    %v1309 = vunpack.c.h.b16 %v1268
    %v1310 = vunpack.c.l.b16 %v1269
    %v1311 = vunpack.c.h.b16 %v1269
    %v1312 = vunpack.c.l.b16 %v1270
    %v1313 = vunpack.c.h.b16 %v1270
    %v1314 = vunpack.c.l.b16 %v1271
    %v1315 = vunpack.c.h.b16 %v1271
    %v1316 = vunpack.c.l.b16 %v1272
    %v1317 = vunpack.c.h.b16 %v1272
    %v1318 = vunpack.c.l.b16 %v1273
    %v1319 = vunpack.c.h.b16 %v1273
    %v1320 = vunpack.c.l.b16 %v1274
    %v1321 = vunpack.c.h.b16 %v1274
    %v1322 = vunpack.c.l.b16 %v1275
    %v1323 = vunpack.c.h.b16 %v1275
    %v1324 = vpack.c.b16 %v1294, %v1292
    %v1325 = vpack.c.b16 %v1295, %v1293
    %v1326 = vpack.c.b16 %v1298, %v1296
    %v1327 = vpack.c.b16 %v1299, %v1297
    %v1328 = vpack.c.b16 %v1302, %v1300
    %v1329 = vpack.c.b16 %v1303, %v1301
    %v1330 = vpack.c.b16 %v1306, %v1304
    %v1331 = vpack.c.b16 %v1307, %v1305
    %v1332 = vpack.c.b16 %v1310, %v1308
    %v1333 = vpack.c.b16 %v1311, %v1309
    %v1334 = vpack.c.b16 %v1314, %v1312
    %v1335 = vpack.c.b16 %v1315, %v1313
    %v1336 = vpack.c.b16 %v1318, %v1316
    %v1337 = vpack.c.b16 %v1319, %v1317
    %v1338 = vpack.c.b16 %v1322, %v1320
    %v1339 = vpack.c.b16 %v1323, %v1321
    %1356 = vmatprep.subr.bf16.mxu0 %v1325
    %1357 = vmatpush1.bf16.msra.mxu0 %v1324
    %1358 = vmatprep.subr.bf16.mxu0 %v1327
    %1359 = vmatpush1.bf16.msra.mxu0 %v1326
    %1360 = vmatprep.subr.bf16.mxu0 %v1329
    %1361 = vmatpush1.bf16.msra.mxu0 %v1328
    %1362 = vmatprep.subr.bf16.mxu0 %v1331
    %1363 = vmatpush1.bf16.msra.mxu0 %v1330
    %1364 = vmatprep.subr.bf16.mxu0 %v1333
    %1365 = vmatpush1.bf16.msra.mxu0 %v1332
    %1366 = vmatprep.subr.bf16.mxu0 %v1335
    %1367 = vmatpush1.bf16.msra.mxu0 %v1334
    %1368 = vmatprep.subr.bf16.mxu0 %v1337
    %1369 = vmatpush1.bf16.msra.mxu0 %v1336
    %1370 = vmatprep.subr.bf16.mxu0 %v1339
    %1371 = vmatpush1.bf16.msra.mxu0 %v1338
    %1372 = vmatprep.subr.bf16.mxu0 0
    %1373 = vmatpush1.bf16.msra.mxu0 0
    %1374 = vmatprep.subr.bf16.mxu0 0
    %1375 = vmatpush1.bf16.msra.mxu0 0
    %1376 = vmatprep.subr.bf16.mxu0 0
    %1377 = vmatpush1.bf16.msra.mxu0 0
    %1378 = vmatprep.subr.bf16.mxu0 0
    %1379 = vmatpush1.bf16.msra.mxu0 0
    %1380 = vmatprep.subr.bf16.mxu0 0
    %1381 = vmatpush1.bf16.msra.mxu0 0
    %1382 = vmatprep.subr.bf16.mxu0 0
    %1383 = vmatpush1.bf16.msra.mxu0 0
    %1384 = vmatprep.subr.bf16.mxu0 0
    %1385 = vmatpush1.bf16.msra.mxu0 0
    %1386 = vmatprep.subr.bf16.mxu0 0
    %1387 = vmatpush1.bf16.msra.mxu0 0
    %1388 = vmatprep.mubr.bf16.mxu0 0
    %1389 = vmatmul.mubr.bf16.gmra.mrb[0].mxu0 %v1251
    %v1390 = vpop.f32.mrb[0].mxu0
    %v1391 = vadd.f32 0.0, %v1390
    %v1392 = vpop.f32.mrb[0].mxu0
    %v1393 = vadd.f32 0.0, %v1392
    %v1394 = vpop.f32.mrb[0].mxu0
    %v1395 = vpop.f32.mrb[0].mxu0
    %1396 = vdwg.mxu0
    %v1405 = vunpack.c.l.b16 %v1252
    %v1406 = vunpack.c.h.b16 %v1252
    %v1407 = vunpack.c.l.b16 %v1253
    %v1408 = vunpack.c.h.b16 %v1253
    %v1409 = vunpack.c.l.b16 %v1254
    %v1410 = vunpack.c.h.b16 %v1254
    %v1411 = vunpack.c.l.b16 %v1255
    %v1412 = vunpack.c.h.b16 %v1255
    %v1413 = vunpack.c.l.b16 %v1256
    %v1414 = vunpack.c.h.b16 %v1256
    %v1415 = vunpack.c.l.b16 %v1257
    %v1416 = vunpack.c.h.b16 %v1257
    %v1417 = vunpack.c.l.b16 %v1258
    %v1418 = vunpack.c.h.b16 %v1258
    %v1419 = vunpack.c.l.b16 %v1259
    %v1420 = vunpack.c.h.b16 %v1259
    %v1421 = vpack.c.b16 %v1407, %v1405
    %v1422 = vpack.c.b16 %v1408, %v1406
    %v1423 = vpack.c.b16 %v1411, %v1409
    %v1424 = vpack.c.b16 %v1412, %v1410
    %v1425 = vpack.c.b16 %v1415, %v1413
    %v1426 = vpack.c.b16 %v1416, %v1414
    %v1427 = vpack.c.b16 %v1419, %v1417
    %v1428 = vpack.c.b16 %v1420, %v1418
    %1437 = vmatprep.subr.bf16.mxu0 %v1422
    %1438 = vmatpush1.bf16.msra.mxu0 %v1421
    %1439 = vmatprep.subr.bf16.mxu0 %v1424
    %1440 = vmatpush1.bf16.msra.mxu0 %v1423
    %1441 = vmatprep.subr.bf16.mxu0 %v1426
    %1442 = vmatpush1.bf16.msra.mxu0 %v1425
    %1443 = vmatprep.subr.bf16.mxu0 %v1428
    %1444 = vmatpush1.bf16.msra.mxu0 %v1427
    %1445 = vmatprep.subr.bf16.mxu0 0
    %1446 = vmatpush1.bf16.msra.mxu0 0
    %1447 = vmatprep.subr.bf16.mxu0 0
    %1448 = vmatpush1.bf16.msra.mxu0 0
    %1449 = vmatprep.subr.bf16.mxu0 0
    %1450 = vmatpush1.bf16.msra.mxu0 0
    %1451 = vmatprep.subr.bf16.mxu0 0
    %1452 = vmatpush1.bf16.msra.mxu0 0
    %1453 = vmatprep.subr.bf16.mxu0 0
    %1454 = vmatpush1.bf16.msra.mxu0 0
    %1455 = vmatprep.subr.bf16.mxu0 0
    %1456 = vmatpush1.bf16.msra.mxu0 0
    %1457 = vmatprep.subr.bf16.mxu0 0
    %1458 = vmatpush1.bf16.msra.mxu0 0
    %1459 = vmatprep.subr.bf16.mxu0 0
    %1460 = vmatpush1.bf16.msra.mxu0 0
    %1461 = vmatprep.subr.bf16.mxu0 0
    %1462 = vmatpush1.bf16.msra.mxu0 0
    %1463 = vmatprep.subr.bf16.mxu0 0
    %1464 = vmatpush1.bf16.msra.mxu0 0
    %1465 = vmatprep.subr.bf16.mxu0 0
    %1466 = vmatpush1.bf16.msra.mxu0 0
    %1467 = vmatprep.subr.bf16.mxu0 0
    %1468 = vmatpush1.bf16.msra.mxu0 0
    %1469 = vmatprep.mubr.bf16.mxu0 0
    %1470 = vmatmul.mubr.bf16.gmra.mrb[0].mxu0 %v519
    %v1471 = vpop.f32.mrb[0].mxu0
    %v1472 = vadd.f32 %v1391, %v1471
    %v1473 = vpop.f32.mrb[0].mxu0
    %v1474 = vadd.f32 %v1393, %v1473
    %v1475 = vpop.f32.mrb[0].mxu0
    %v1476 = vpop.f32.mrb[0].mxu0
    %1477 = vdwg.mxu0
    %v1478 = vld [vmem:[%s8] sm:$0x3]
    %v1480 = vlaneseq
    %v1481 = vshrl.u32 %v1480, 7
    %v1482 = vsub.s32 0, %v1481
    %v1483 = vrot.slane %v1478, %v1482
    %v1484 = vlaneseq
    %v1485 = vshrl.u32 %v1484, 7
    %v1486 = vsub.s32 1, %v1485
    %v1487 = vrot.slane %v1478, %v1486
    %v1490 = vadd.f32 %v1472, %v1483
    %v1491 = vadd.f32 %v1474, %v1487
    %1492 = vst [vmem:[#allocation14] sm:$0xff] %v1490
    %1493 = vst [vmem:[#allocation14 + $0x8] sm:$0xff] %v1491
    // Predicated region
    $region70: #{tpu_custom_call.1} parent=1 // pred_check
      _
    $region71: #{tpu_custom_call.1} parent=1 // pred_check_branch
      %1495 = sbr.rel (0) target = $region73
    $region72: #{tpu_custom_call.1} parent=1 // pred_region
      %s1497 = ssub.s32 256, 256
      %1498 = vsyncadd [#allocation4], %s1497
      %s1500 = sshll.u32 [#allocation14], 4
      %s1501 = int_to_ptr.vmem [resolvable:$true] %s1500
      %1503 = dma.vmem_to_hbm [thread:$0]  %s1501, 256, %s9, [#allocation4]
    $region73: #{tpu_custom_call.1} parent=1 // pred_fallthru
      _
    // Predicated region
    $region74: #{tpu_custom_call.1} parent=1 // pred_check
      _
    $region75: #{tpu_custom_call.1} parent=1 // pred_check_branch
      %1505 = sbr.rel (0) target = $region77
    $region76: #{tpu_custom_call.1} parent=1 // pred_region
      %s1507 = ssub.s32 256, 256
      %1508 = vsyncadd [#allocation16], %s1507
      %s1509 = sshll.u32 [#allocation15], 4
      %s1510 = int_to_ptr.vmem [resolvable:$true] %s1509
      %1515 = dma.vmem_to_hbm [thread:$0]  %s1510, 256, %s10, [#allocation16], 128, 128, 8
    $region77: #{tpu_custom_call.1} parent=1 // pred_fallthru
      _
    // Predicated region
    $region78: #{tpu_custom_call.1} parent=1 // pred_check
      _
    $region79: #{tpu_custom_call.1} parent=1 // pred_check_branch
      %1517 = sbr.rel (0) target = $region81
    $region80: #{tpu_custom_call.1} parent=1 // pred_region
      %s1519 = ssub.s32 256, 256
      %1520 = vsyncadd [#allocation16], %s1519
      %s1521 = sshll.u32 [#allocation17], 4
      %s1522 = int_to_ptr.vmem [resolvable:$true] %s1521
      %1527 = dma.vmem_to_hbm [thread:$0]  %s1522, 256, %s11, [#allocation16], 128, 128, 8
    $region81: #{tpu_custom_call.1} parent=1 // pred_fallthru
      _
    // Predicated region
    $region82: #{tpu_custom_call.1} parent=1 // pred_check
      _
    $region83: #{tpu_custom_call.1} parent=1 // pred_check_branch
      %1529 = sbr.rel (0) target = $region85
    $region84: #{tpu_custom_call.1} parent=1 // pred_region
      %1530 = dma.done [#allocation4], 256
    $region85: #{tpu_custom_call.1} parent=1 // pred_fallthru
      _
    // Predicated region
    $region86: #{tpu_custom_call.1} parent=1 // pred_check
      _
    $region87: #{tpu_custom_call.1} parent=1 // pred_check_branch
      %1532 = sbr.rel (0) target = $region89
    $region88: #{tpu_custom_call.1} parent=1 // pred_region
      %1533 = dma.done [#allocation16], 256
    $region89: #{tpu_custom_call.1} parent=1 // pred_fallthru
      _
    // Predicated region
    $region90: #{tpu_custom_call.1} parent=1 // pred_check
      _
    $region91: #{tpu_custom_call.1} parent=1 // pred_check_branch
      %1535 = sbr.rel (0) target = $region93
    $region92: #{tpu_custom_call.1} parent=1 // pred_region
      %1536 = dma.done [#allocation16], 256
    $region93: #{tpu_custom_call.1} parent=1 // pred_fallthru
      _
    %1537 = vsyncpa [#allocation3], 1
    %1538 = vsyncpa [#allocation6], 1
    %1539 = vsyncpa [#allocation9], 1
    %1540 = vsyncpa [#allocation12], 1
    %1541 = vsyncpa [#allocation4], 1
    %1542 = vsyncpa [#allocation16], 1

</llo_original>
